<compile_context>
chip_gen: v5e
topology: v5e:2x2
jax: 0.10.0
libtpu: 0.0.40
codegen_flags: <defaults>
</compile_context>

<pallas_src>
import functools

import jax
import jax.numpy as jnp
from jax.experimental import pallas as pl
from jax.experimental.pallas import tpu as pltpu

DIM = 512         # head output dim (module's `dim`)
FEAT = 768        # swin_s backbone feature dim (head input)
PATCH = 4         # synthetic patch size
LANE = 128
SUBLANE = 8
ROW_BUDGET = 1024  # max (images * patch rows) per grid step (~3 MiB f32 temp)


def _round_up(x, m):
    return (x + m - 1) // m * m


def _fused_backbone_head_kernel(patches_ref, we_ref, be_ref, wh_ref, bh_ref,
                                out_ref, acc_ref, *, inv_p):
    """Grid = (n_row_tiles,) -- reduction over patch-row tiles.

    patches_ref : (N, TR, Cp_pad) bf16  patch rows of ALL images, this tile
    we_ref      : (Cp_pad, FEAT)  bf16  patch-embed weight (zero-padded rows)
    be_ref      : (1, FEAT)       f32   patch-embed bias
    wh_ref      : (FEAT, DIM)     bf16  head weight  (Linear(768, 512))
    bh_ref      : (1, DIM)        f32   head bias
    out_ref     : (N, DIM)        f32   per-image 512-d head output
    acc_ref     : (N, FEAT)       f32   running sum over patches (VMEM scratch)
    """
    r = pl.program_id(0)

    @pl.when(r == 0)
    def _():
        acc_ref[...] = jnp.zeros_like(acc_ref)

    n, tr, cp = patches_ref.shape
    # One big MXU matmul across all images (M = N*TR rows), bf16 -> f32 acc.
    p = patches_ref[...].reshape(n * tr, cp)
    emb = jnp.dot(p, we_ref[...],
                  preferred_element_type=jnp.float32)       # (N*TR, FEAT)
    # Per-image partial sum over this tile's patch rows (padded rows are 0).
    acc_ref[...] += emb.reshape(n, tr, FEAT).sum(axis=1)    # (N, FEAT)

    @pl.when(r == pl.num_programs(0) - 1)
    def _():
        # Mean pool + embed bias (bias after pooling is equivalent), then the
        # head Linear(768, 512), batched over all images at once.
        feat = acc_ref[...] * inv_p + be_ref[...]            # (N, FEAT) f32
        out = jnp.dot(feat.astype(wh_ref.dtype), wh_ref[...],
                      preferred_element_type=jnp.float32) + bh_ref[...]
        out_ref[...] = out.astype(out_ref.dtype)


def _run_fused(patches, we_p, be, wh, bh, *, p_actual, tr):
    n_pad, p_pad, cp_pad = patches.shape
    n_row_tiles = p_pad // tr

    kernel = functools.partial(_fused_backbone_head_kernel,
                               inv_p=1.0 / float(p_actual))

    return pl.pallas_call(
        kernel,
        out_shape=jax.ShapeDtypeStruct((n_pad, DIM), jnp.float32),
        grid_spec=pltpu.PrefetchScalarGridSpec(
            num_scalar_prefetch=0,
            grid=(n_row_tiles,),
            in_specs=[
                pl.BlockSpec((n_pad, tr, cp_pad), lambda r: (0, r, 0)),
                pl.BlockSpec((cp_pad, FEAT), lambda r: (0, 0)),
                pl.BlockSpec((1, FEAT), lambda r: (0, 0)),
                pl.BlockSpec((FEAT, DIM), lambda r: (0, 0)),
                pl.BlockSpec((1, DIM), lambda r: (0, 0)),
            ],
            out_specs=pl.BlockSpec((n_pad, DIM), lambda r: (0, 0)),
            scratch_shapes=[pltpu.VMEM((n_pad, FEAT), jnp.float32)],
        ),
        compiler_params=pltpu.CompilerParams(
            dimension_semantics=("arbitrary",)),
    )(patches, we_p, be, wh, bh)


def _extract_patches(x_nchw, patch):
    """NCHW image -> (B, P, C*patch*patch) patch rows (layout glue for XLA)."""
    B, C, H, W = x_nchw.shape
    hp, wp = H // patch, W // patch
    x = x_nchw[:, :, :hp * patch, :wp * patch]
    x = x.reshape(B, C, hp, patch, wp, patch)
    x = jnp.transpose(x, (0, 2, 4, 1, 3, 5))            # B, hp, wp, C, p, p
    return x.reshape(B, hp * wp, C * patch * patch)


@jax.jit
def comparsion_models_forward(params, x1, x2, x3):
    """Equivalent of comparsion_models.forward with name='swin_s'.

    Returns f of shape (B, 3*512, 1, 1): channel-wise concat of the three
    512-d branch features (each .view(-1, 512, 1, 1))."""
    we, be, wh, bh = params
    B = x1.shape[0]

    # Fuse the three branches: one batch of 3*B images through the shared net.
    x = jnp.concatenate([x1, x2, x3], axis=0).astype(jnp.float32)  # (3B,C,H,W)
    n_images = 3 * B

    patches = _extract_patches(x, PATCH)                 # (3B, P, Cp)
    P, Cp = patches.shape[1], patches.shape[2]

    # Lane-dense feature axis, sublane-aligned image axis, row-tile-aligned
    # patch axis.  Zero padding contributes nothing to the pooled sums.
    cp_pad = _round_up(Cp, LANE)
    n_pad = _round_up(n_images, SUBLANE)
    p_aligned = _round_up(P, SUBLANE)
    tr = max(SUBLANE, (ROW_BUDGET // n_pad) // SUBLANE * SUBLANE)
    tr = min(tr, p_aligned)
    p_pad = _round_up(p_aligned, tr)

    patches = jnp.pad(patches, ((0, n_pad - n_images),
                                (0, p_pad - P),
                                (0, cp_pad - Cp))).astype(jnp.bfloat16)

    we_p = jnp.pad(we, ((0, cp_pad - we.shape[0]), (0, 0))).astype(jnp.bfloat16)
    wh_b = wh.astype(jnp.bfloat16)
    be_f = be.astype(jnp.float32).reshape(1, FEAT)
    bh_f = bh.astype(jnp.float32).reshape(1, DIM)

    feats = _run_fused(patches, we_p, be_f, wh_b, bh_f,
                       p_actual=P, tr=tr)                # (N_pad, 512)
    feats = feats[:n_images]                             # drop image padding

    f1, f2, f3 = jnp.split(feats, 3, axis=0)
    f1 = f1.reshape(B, DIM, 1, 1)                        # .view(-1, 512, 1, 1)
    f2 = f2.reshape(B, DIM, 1, 1)
    f3 = f3.reshape(B, DIM, 1, 1)
    return jnp.concatenate([f1, f2, f3], axis=1)         # (B, 1536, 1, 1)


def init_params(key, in_channels=3):
    cp = in_channels * PATCH * PATCH
    k1, k2, k3, k4 = jax.random.split(key, 4)
    we = jax.random.normal(k1, (cp, FEAT), jnp.float32) * (1.0 / jnp.sqrt(cp))
    be = jax.random.normal(k2, (1, FEAT), jnp.float32) * 0.01
    wh = jax.random.normal(k3, (FEAT, DIM), jnp.float32) * (1.0 / jnp.sqrt(FEAT))
    bh = jax.random.normal(k4, (1, DIM), jnp.float32) * 0.01
    return we, be, wh, bh


if __name__ == "__main__":
    key = jax.random.PRNGKey(0)
    kp, kx1, kx2, kx3 = jax.random.split(key, 4)

    B, C, H, W = 2, 3, 16, 16  # small NCHW images, like the PyTorch inputs
    params = init_params(kp, in_channels=C)
    x1 = jax.random.normal(kx1, (B, C, H, W), jnp.float32)
    x2 = jax.random.normal(kx2, (B, C, H, W), jnp.float32)
    x3 = jax.random.normal(kx3, (B, C, H, W), jnp.float32)

    out = comparsion_models_forward(params, x1, x2, x3)
    out = jax.block_until_ready(out)

    assert out.shape == (B, 3 * DIM, 1, 1), out.shape
    assert out.dtype == jnp.float32
    assert bool(jnp.all(jnp.isfinite(out)))
    print("KERNEL_OK")
</pallas_src>

<mosaic_0001>
module attributes {stable_mosaic.version = 11 : i64} {
  func.func @_fused_backbone_head_kernel(%arg0: i32, %arg1: memref<8x16x128xbf16, #tpu.memory_space<vmem>>, %arg2: memref<128x768xbf16, #tpu.memory_space<vmem>>, %arg3: memref<1x768xf32, #tpu.memory_space<vmem>>, %arg4: memref<768x512xbf16, #tpu.memory_space<vmem>>, %arg5: memref<1x512xf32, #tpu.memory_space<vmem>>, %arg6: memref<8x512xf32, #tpu.memory_space<vmem>>, %arg7: memref<8x768xf32, #tpu.memory_space<vmem>>) attributes {dimension_semantics = [#tpu.dimension_semantics<arbitrary>], iteration_bounds = array<i64: 1>, scalar_prefetch = 0 : i64, scratch_operands = 1 : i64, tpu.core_type = #tpu.core_type<tc>, window_params = [{transform_indices = @transform_0, window_bounds = array<i64: 8, 16, 128>}, {pipeline_mode = #tpu.pipeline_mode<synchronous>, transform_indices = @transform_1, window_bounds = array<i64: 128, 768>}, {pipeline_mode = #tpu.pipeline_mode<synchronous>, transform_indices = @transform_2, window_bounds = array<i64: 1, 768>}, {pipeline_mode = #tpu.pipeline_mode<synchronous>, transform_indices = @transform_3, window_bounds = array<i64: 768, 512>}, {pipeline_mode = #tpu.pipeline_mode<synchronous>, transform_indices = @transform_4, window_bounds = array<i64: 1, 512>}, {pipeline_mode = #tpu.pipeline_mode<synchronous>, transform_indices = @transform_5, window_bounds = array<i64: 8, 512>}]} {
    %c0_i32 = arith.constant 0 : i32
    %0 = arith.cmpi eq, %arg0, %c0_i32 : i32
    %1 = arith.extui %0 : i1 to i32
    %c0_i32_0 = arith.constant 0 : i32
    %2 = arith.cmpi ne, %1, %c0_i32_0 : i32
    scf.if %2 {
      %cst_12 = arith.constant 0.000000e+00 : f32
      %15 = vector.broadcast %cst_12 : f32 to vector<8x768xf32>
      %c0_13 = arith.constant 0 : index
      %c0_14 = arith.constant 0 : index
      %16 = vector.load %arg7[%c0_13, %c0_14] : memref<8x768xf32, #tpu.memory_space<vmem>>, vector<8x768xf32>
      tpu.vector_store %arg7[%c0_13, %c0_14], %15 {strides = array<i32>} : memref<8x768xf32, #tpu.memory_space<vmem>>, vector<8x768xf32>,
    } else {
    }
    %c0 = arith.constant 0 : index
    %c0_1 = arith.constant 0 : index
    %c0_2 = arith.constant 0 : index
    %3 = vector.load %arg1[%c0, %c0_1, %c0_2] : memref<8x16x128xbf16, #tpu.memory_space<vmem>>, vector<8x16x128xbf16>
    %4 = vector.shape_cast %3 : vector<8x16x128xbf16> to vector<128x128xbf16>
    %c0_3 = arith.constant 0 : index
    %c0_4 = arith.constant 0 : index
    %5 = vector.load %arg2[%c0_3, %c0_4] : memref<128x768xbf16, #tpu.memory_space<vmem>>, vector<128x768xbf16>
    %cst = arith.constant dense<0.000000e+00> : vector<128x768xf32>
    %6 = tpu.matmul %4, %5, %cst {dimension_numbers = #tpu.dot_dimension_numbers<[1], [0], [0], [1], [0, 0, 1, 1], [], []>} : vector<128x128xbf16>, vector<128x768xbf16>, vector<128x768xf32> -> vector<128x768xf32>
    %c0_5 = arith.constant 0 : index
    %c0_6 = arith.constant 0 : index
    %7 = vector.load %arg7[%c0_5, %c0_6] : memref<8x768xf32, #tpu.memory_space<vmem>>, vector<8x768xf32>
    %8 = vector.shape_cast %6 : vector<128x768xf32> to vector<8x16x768xf32>
    %cst_7 = arith.constant dense<0.000000e+00> : vector<8x768xf32>
    %9 = vector.multi_reduction <add>, %8, %cst_7 [1] : vector<8x16x768xf32> to vector<8x768xf32>
    %10 = arith.addf %7, %9 : vector<8x768xf32>
    %c0_8 = arith.constant 0 : index
    %c0_9 = arith.constant 0 : index
    %11 = vector.load %arg7[%c0_8, %c0_9] : memref<8x768xf32, #tpu.memory_space<vmem>>, vector<8x768xf32>
    tpu.vector_store %arg7[%c0_8, %c0_9], %10 {strides = array<i32>} : memref<8x768xf32, #tpu.memory_space<vmem>>, vector<8x768xf32>,
    %c0_i32_10 = arith.constant 0 : i32
    %12 = arith.cmpi eq, %arg0, %c0_i32_10 : i32
    %13 = arith.extui %12 : i1 to i32
    %c0_i32_11 = arith.constant 0 : i32
    %14 = arith.cmpi ne, %13, %c0_i32_11 : i32
    scf.if %14 {
      %c0_12 = arith.constant 0 : index
      %c0_13 = arith.constant 0 : index
      %15 = vector.load %arg7[%c0_12, %c0_13] : memref<8x768xf32, #tpu.memory_space<vmem>>, vector<8x768xf32>
      %cst_14 = arith.constant 6.250000e-02 : f32
      %16 = vector.broadcast %cst_14 : f32 to vector<8x768xf32>
      %17 = arith.mulf %15, %16 : vector<8x768xf32>
      %c0_15 = arith.constant 0 : index
      %c0_16 = arith.constant 0 : index
      %18 = vector.load %arg3[%c0_15, %c0_16] : memref<1x768xf32, #tpu.memory_space<vmem>>, vector<1x768xf32>
      %19 = vector.broadcast %18 : vector<1x768xf32> to vector<8x768xf32>
      %20 = arith.addf %17, %19 : vector<8x768xf32>
      %21 = arith.truncf %20 : vector<8x768xf32> to vector<8x768xbf16>
      %c0_17 = arith.constant 0 : index
      %c0_18 = arith.constant 0 : index
      %22 = vector.load %arg4[%c0_17, %c0_18] : memref<768x512xbf16, #tpu.memory_space<vmem>>, vector<768x512xbf16>
      %cst_19 = arith.constant dense<0.000000e+00> : vector<8x512xf32>
      %23 = tpu.matmul %21, %22, %cst_19 {dimension_numbers = #tpu.dot_dimension_numbers<[1], [0], [0], [1], [0, 0, 1, 1], [], []>} : vector<8x768xbf16>, vector<768x512xbf16>, vector<8x512xf32> -> vector<8x512xf32>
      %c0_20 = arith.constant 0 : index
      %c0_21 = arith.constant 0 : index
      %24 = vector.load %arg5[%c0_20, %c0_21] : memref<1x512xf32, #tpu.memory_space<vmem>>, vector<1x512xf32>
      %25 = vector.broadcast %24 : vector<1x512xf32> to vector<8x512xf32>
      %26 = arith.addf %23, %25 : vector<8x512xf32>
      %c0_22 = arith.constant 0 : index
      %c0_23 = arith.constant 0 : index
      %27 = vector.load %arg6[%c0_22, %c0_23] : memref<8x512xf32, #tpu.memory_space<vmem>>, vector<8x512xf32>
      tpu.vector_store %arg6[%c0_22, %c0_23], %26 {strides = array<i32>} : memref<8x512xf32, #tpu.memory_space<vmem>>, vector<8x512xf32>,
    } else {
    }
    return
  }
  func.func @transform_0(%arg0: i32) -> (i32, i32, i32) {
    %c0_i32 = arith.constant 0 : i32
    %c0_i32_0 = arith.constant 0 : i32
    %c0_i32_1 = arith.constant 0 : i32
    return %c0_i32, %arg0, %c0_i32_0 : i32, i32, i32
  }
  func.func @transform_1(%arg0: i32) -> (i32, i32) {
    %c0_i32 = arith.constant 0 : i32
    %c0_i32_0 = arith.constant 0 : i32
    %c0_i32_1 = arith.constant 0 : i32
    return %c0_i32, %c0_i32_0 : i32, i32
  }
  func.func @transform_2(%arg0: i32) -> (i32, i32) {
    %c0_i32 = arith.constant 0 : i32
    %c0_i32_0 = arith.constant 0 : i32
    %c0_i32_1 = arith.constant 0 : i32
    return %c0_i32, %c0_i32_0 : i32, i32
  }
  func.func @transform_3(%arg0: i32) -> (i32, i32) {
    %c0_i32 = arith.constant 0 : i32
    %c0_i32_0 = arith.constant 0 : i32
    %c0_i32_1 = arith.constant 0 : i32
    return %c0_i32, %c0_i32_0 : i32, i32
  }
  func.func @transform_4(%arg0: i32) -> (i32, i32) {
    %c0_i32 = arith.constant 0 : i32
    %c0_i32_0 = arith.constant 0 : i32
    %c0_i32_1 = arith.constant 0 : i32
    return %c0_i32, %c0_i32_0 : i32, i32
  }
  func.func @transform_5(%arg0: i32) -> (i32, i32) {
    %c0_i32 = arith.constant 0 : i32
    %c0_i32_0 = arith.constant 0 : i32
    %c0_i32_1 = arith.constant 0 : i32
    return %c0_i32, %c0_i32_0 : i32, i32
  }
}

</mosaic_0001>

<llo_original>
// kernel: comparsion_models_forward.1
$region0: #{comparsion_models_forward.1}
  #allocation0 [shape = 'u32[]', space=smem, size = 0x4, offset = 0x4, fixed_abs, tag = 'smem constant byte address 0x4 - core index']
  #allocation1 [shape = 'u32[72,128]{1,0:T(1,128)}', space=vmem, size = 0x9000, scoped, tag = 'internal scratch']
  #allocation2 [shape = 'f32[8,768]{1,0:T(8,128)}', space=vmem, size = 0x6000, scoped, tag = 'scratch operand']
  %s0 = inlined_call_operand.vmem [shape: bf16[8,16,128], index: 0, kind: input, shape index: {}]
  %s1 = inlined_call_operand.vmem [shape: bf16[128,768], index: 1, kind: input, shape index: {}]
  %s2 = inlined_call_operand.vmem [shape: f32[1,768], index: 2, kind: input, shape index: {}]
  %s3 = inlined_call_operand.vmem [shape: bf16[768,512], index: 3, kind: input, shape index: {}]
  %s4 = inlined_call_operand.vmem [shape: f32[1,512], index: 4, kind: input, shape index: {}]
  %s5 = inlined_call_operand.vmem [shape: f32[8,512], index: 5, kind: output, shape index: {}]
  %s6 = sld [smem:[#allocation0]]
  $region38: #{comparsion_models_forward.1} parent=0
    _
  %s8 = ssub.s32 1, %s6
  %s9 = scalar_select 0, %s8, %s6
  // Predicated region
  $region2: #{comparsion_models_forward.1} parent=0 // pred_check
    _
  $region3: #{comparsion_models_forward.1} parent=0 // pred_check_branch
    %11 = sbr.rel (0) target = $region5
  $region4: #{comparsion_models_forward.1} parent=0 // pred_region
    _
  $region5: #{comparsion_models_forward.1} parent=0 // pred_fallthru
    _
  // Predicated region
  $region6: #{comparsion_models_forward.1} parent=0 // pred_check
    _
  $region7: #{comparsion_models_forward.1} parent=0 // pred_check_branch
    %13 = sbr.rel (0) target = $region9
  $region8: #{comparsion_models_forward.1} parent=0 // pred_region
    _
  $region9: #{comparsion_models_forward.1} parent=0 // pred_fallthru
    _
  // Predicated region
  $region10: #{comparsion_models_forward.1} parent=0 // pred_check
    _
  $region11: #{comparsion_models_forward.1} parent=0 // pred_check_branch
    %15 = sbr.rel (0) target = $region13
  $region12: #{comparsion_models_forward.1} parent=0 // pred_region
    _
  $region13: #{comparsion_models_forward.1} parent=0 // pred_fallthru
    _
  // Predicated region
  $region14: #{comparsion_models_forward.1} parent=0 // pred_check
    _
  $region15: #{comparsion_models_forward.1} parent=0 // pred_check_branch
    %17 = sbr.rel (0) target = $region17
  $region16: #{comparsion_models_forward.1} parent=0 // pred_region
    _
  $region17: #{comparsion_models_forward.1} parent=0 // pred_fallthru
    _
  // Predicated region
  $region18: #{comparsion_models_forward.1} parent=0 // pred_check
    _
  $region19: #{comparsion_models_forward.1} parent=0 // pred_check_branch
    %19 = sbr.rel (0) target = $region21
  $region20: #{comparsion_models_forward.1} parent=0 // pred_region
    _
  $region21: #{comparsion_models_forward.1} parent=0 // pred_fallthru
    _
  %p20 = scmp.eq.s32.totalorder 0, 0
  // Predicated region
  $region22: #{comparsion_models_forward.1} parent=0 // pred_check
    %p21 = pneg %p20
  $region23: #{comparsion_models_forward.1} parent=0 // pred_check_branch
    %23 = sbr.rel (%p21) target = $region25
  $region24: #{comparsion_models_forward.1} parent=0 // pred_region
    %24 = vst [vmem:[#allocation2] sm:$0xff] 0.0
    %25 = vst [vmem:[#allocation2 + $0x8] sm:$0xff] 0.0
    %26 = vst [vmem:[#allocation2 + $0x10] sm:$0xff] 0.0
    %27 = vst [vmem:[#allocation2 + $0x18] sm:$0xff] 0.0
    %28 = vst [vmem:[#allocation2 + $0x20] sm:$0xff] 0.0
    %29 = vst [vmem:[#allocation2 + $0x28] sm:$0xff] 0.0
  $region25: #{comparsion_models_forward.1} parent=0 // pred_fallthru
    _
  %v30 = vld [vmem:[%s0] sm:$0xf]
  %v31 = vld [vmem:[%s0 + $0x4] sm:$0xf]
  %v32 = vld [vmem:[%s0 + $0x8] sm:$0xf]
  %v33 = vld [vmem:[%s0 + $0xc] sm:$0xf]
  %v34 = vld [vmem:[%s0 + $0x10] sm:$0xf]
  %v35 = vld [vmem:[%s0 + $0x14] sm:$0xf]
  %v36 = vld [vmem:[%s0 + $0x18] sm:$0xf]
  %v37 = vld [vmem:[%s0 + $0x1c] sm:$0xf]
  %v38 = vld [vmem:[%s0 + $0x20] sm:$0xf]
  %v39 = vld [vmem:[%s0 + $0x24] sm:$0xf]
  %v40 = vld [vmem:[%s0 + $0x28] sm:$0xf]
  %v41 = vld [vmem:[%s0 + $0x2c] sm:$0xf]
  %v42 = vld [vmem:[%s0 + $0x30] sm:$0xf]
  %v43 = vld [vmem:[%s0 + $0x34] sm:$0xf]
  %v44 = vld [vmem:[%s0 + $0x38] sm:$0xf]
  %v45 = vld [vmem:[%s0 + $0x3c] sm:$0xf]
  %v46 = vld [vmem:[%s1] sm:$0xff]
  %v47 = vld [vmem:[%s1 + $0x8] sm:$0xff]
  %v48 = vld [vmem:[%s1 + $0x10] sm:$0xff]
  %v49 = vld [vmem:[%s1 + $0x18] sm:$0xff]
  %v50 = vld [vmem:[%s1 + $0x20] sm:$0xff]
  %v51 = vld [vmem:[%s1 + $0x28] sm:$0xff]
  %v52 = vld [vmem:[%s1 + $0x30] sm:$0xff]
  %v53 = vld [vmem:[%s1 + $0x38] sm:$0xff]
  %v54 = vld [vmem:[%s1 + $0x40] sm:$0xff]
  %v55 = vld [vmem:[%s1 + $0x48] sm:$0xff]
  %v56 = vld [vmem:[%s1 + $0x50] sm:$0xff]
  %v57 = vld [vmem:[%s1 + $0x58] sm:$0xff]
  %v58 = vld [vmem:[%s1 + $0x60] sm:$0xff]
  %v59 = vld [vmem:[%s1 + $0x68] sm:$0xff]
  %v60 = vld [vmem:[%s1 + $0x70] sm:$0xff]
  %v61 = vld [vmem:[%s1 + $0x78] sm:$0xff]
  %v62 = vld [vmem:[%s1 + $0x80] sm:$0xff]
  %v63 = vld [vmem:[%s1 + $0x88] sm:$0xff]
  %v64 = vld [vmem:[%s1 + $0x90] sm:$0xff]
  %v65 = vld [vmem:[%s1 + $0x98] sm:$0xff]
  %v66 = vld [vmem:[%s1 + $0xa0] sm:$0xff]
  %v67 = vld [vmem:[%s1 + $0xa8] sm:$0xff]
  %v68 = vld [vmem:[%s1 + $0xb0] sm:$0xff]
  %v69 = vld [vmem:[%s1 + $0xb8] sm:$0xff]
  %v70 = vld [vmem:[%s1 + $0xc0] sm:$0xff]
  %v71 = vld [vmem:[%s1 + $0xc8] sm:$0xff]
  %v72 = vld [vmem:[%s1 + $0xd0] sm:$0xff]
  %v73 = vld [vmem:[%s1 + $0xd8] sm:$0xff]
  %v74 = vld [vmem:[%s1 + $0xe0] sm:$0xff]
  %v75 = vld [vmem:[%s1 + $0xe8] sm:$0xff]
  %v76 = vld [vmem:[%s1 + $0xf0] sm:$0xff]
  %v77 = vld [vmem:[%s1 + $0xf8] sm:$0xff]
  %v78 = vld [vmem:[%s1 + $0x100] sm:$0xff]
  %v79 = vld [vmem:[%s1 + $0x108] sm:$0xff]
  %v80 = vld [vmem:[%s1 + $0x110] sm:$0xff]
  %v81 = vld [vmem:[%s1 + $0x118] sm:$0xff]
  %v82 = vld [vmem:[%s1 + $0x120] sm:$0xff]
  %v83 = vld [vmem:[%s1 + $0x128] sm:$0xff]
  %v84 = vld [vmem:[%s1 + $0x130] sm:$0xff]
  %v85 = vld [vmem:[%s1 + $0x138] sm:$0xff]
  %v86 = vld [vmem:[%s1 + $0x140] sm:$0xff]
  %v87 = vld [vmem:[%s1 + $0x148] sm:$0xff]
  %v88 = vld [vmem:[%s1 + $0x150] sm:$0xff]
  %v89 = vld [vmem:[%s1 + $0x158] sm:$0xff]
  %v90 = vld [vmem:[%s1 + $0x160] sm:$0xff]
  %v91 = vld [vmem:[%s1 + $0x168] sm:$0xff]
  %v92 = vld [vmem:[%s1 + $0x170] sm:$0xff]
  %v93 = vld [vmem:[%s1 + $0x178] sm:$0xff]
  %v110 = vunpack.c.l.b16 %v30
  %v111 = vunpack.c.l.b16 %v31
  %v112 = vunpack.c.l.b16 %v32
  %v113 = vunpack.c.l.b16 %v33
  %v114 = vunpack.c.l.b16 %v34
  %v115 = vunpack.c.l.b16 %v35
  %v116 = vunpack.c.l.b16 %v36
  %v117 = vunpack.c.l.b16 %v37
  %v118 = vunpack.c.l.b16 %v38
  %v119 = vunpack.c.l.b16 %v39
  %v120 = vunpack.c.l.b16 %v40
  %v121 = vunpack.c.l.b16 %v41
  %v122 = vunpack.c.l.b16 %v42
  %v123 = vunpack.c.l.b16 %v43
  %v124 = vunpack.c.l.b16 %v44
  %v125 = vunpack.c.l.b16 %v45
  %v126 = vpack.c.b16 %v111, %v110
  %v127 = vpack.c.b16 %v113, %v112
  %v128 = vpack.c.b16 %v115, %v114
  %v129 = vpack.c.b16 %v117, %v116
  %v130 = vpack.c.b16 %v119, %v118
  %v131 = vpack.c.b16 %v121, %v120
  %v132 = vpack.c.b16 %v123, %v122
  %v133 = vpack.c.b16 %v125, %v124
  %v190 = vunpack.c.l.b16 %v46
  %v191 = vunpack.c.h.b16 %v46
  %v192 = vunpack.c.l.b16 %v47
  %v193 = vunpack.c.h.b16 %v47
  %v194 = vunpack.c.l.b16 %v48
  %v195 = vunpack.c.h.b16 %v48
  %v196 = vunpack.c.l.b16 %v49
  %v197 = vunpack.c.h.b16 %v49
  %v198 = vunpack.c.l.b16 %v50
  %v199 = vunpack.c.h.b16 %v50
  %v200 = vunpack.c.l.b16 %v51
  %v201 = vunpack.c.h.b16 %v51
  %v202 = vunpack.c.l.b16 %v52
  %v203 = vunpack.c.h.b16 %v52
  %v204 = vunpack.c.l.b16 %v53
  %v205 = vunpack.c.h.b16 %v53
  %v206 = vunpack.c.l.b16 %v54
  %v207 = vunpack.c.h.b16 %v54
  %v208 = vunpack.c.l.b16 %v55
  %v209 = vunpack.c.h.b16 %v55
  %v210 = vunpack.c.l.b16 %v56
  %v211 = vunpack.c.h.b16 %v56
  %v212 = vunpack.c.l.b16 %v57
  %v213 = vunpack.c.h.b16 %v57
  %v214 = vunpack.c.l.b16 %v58
  %v215 = vunpack.c.h.b16 %v58
  %v216 = vunpack.c.l.b16 %v59
  %v217 = vunpack.c.h.b16 %v59
  %v218 = vunpack.c.l.b16 %v60
  %v219 = vunpack.c.h.b16 %v60
  %v220 = vunpack.c.l.b16 %v61
  %v221 = vunpack.c.h.b16 %v61
  %v222 = vunpack.c.l.b16 %v62
  %v223 = vunpack.c.h.b16 %v62
  %v224 = vunpack.c.l.b16 %v63
  %v225 = vunpack.c.h.b16 %v63
  %v226 = vunpack.c.l.b16 %v64
  %v227 = vunpack.c.h.b16 %v64
  %v228 = vunpack.c.l.b16 %v65
  %v229 = vunpack.c.h.b16 %v65
  %v230 = vunpack.c.l.b16 %v66
  %v231 = vunpack.c.h.b16 %v66
  %v232 = vunpack.c.l.b16 %v67
  %v233 = vunpack.c.h.b16 %v67
  %v234 = vunpack.c.l.b16 %v68
  %v235 = vunpack.c.h.b16 %v68
  %v236 = vunpack.c.l.b16 %v69
  %v237 = vunpack.c.h.b16 %v69
  %v238 = vunpack.c.l.b16 %v70
  %v239 = vunpack.c.h.b16 %v70
  %v240 = vunpack.c.l.b16 %v71
  %v241 = vunpack.c.h.b16 %v71
  %v242 = vunpack.c.l.b16 %v72
  %v243 = vunpack.c.h.b16 %v72
  %v244 = vunpack.c.l.b16 %v73
  %v245 = vunpack.c.h.b16 %v73
  %v246 = vunpack.c.l.b16 %v74
  %v247 = vunpack.c.h.b16 %v74
  %v248 = vunpack.c.l.b16 %v75
  %v249 = vunpack.c.h.b16 %v75
  %v250 = vunpack.c.l.b16 %v76
  %v251 = vunpack.c.h.b16 %v76
  %v252 = vunpack.c.l.b16 %v77
  %v253 = vunpack.c.h.b16 %v77
  %v254 = vunpack.c.l.b16 %v78
  %v255 = vunpack.c.h.b16 %v78
  %v256 = vunpack.c.l.b16 %v79
  %v257 = vunpack.c.h.b16 %v79
  %v258 = vunpack.c.l.b16 %v80
  %v259 = vunpack.c.h.b16 %v80
  %v260 = vunpack.c.l.b16 %v81
  %v261 = vunpack.c.h.b16 %v81
  %v262 = vunpack.c.l.b16 %v82
  %v263 = vunpack.c.h.b16 %v82
  %v264 = vunpack.c.l.b16 %v83
  %v265 = vunpack.c.h.b16 %v83
  %v266 = vunpack.c.l.b16 %v84
  %v267 = vunpack.c.h.b16 %v84
  %v268 = vunpack.c.l.b16 %v85
  %v269 = vunpack.c.h.b16 %v85
  %v270 = vunpack.c.l.b16 %v86
  %v271 = vunpack.c.h.b16 %v86
  %v272 = vunpack.c.l.b16 %v87
  %v273 = vunpack.c.h.b16 %v87
  %v274 = vunpack.c.l.b16 %v88
  %v275 = vunpack.c.h.b16 %v88
  %v276 = vunpack.c.l.b16 %v89
  %v277 = vunpack.c.h.b16 %v89
  %v278 = vunpack.c.l.b16 %v90
  %v279 = vunpack.c.h.b16 %v90
  %v280 = vunpack.c.l.b16 %v91
  %v281 = vunpack.c.h.b16 %v91
  %v282 = vunpack.c.l.b16 %v92
  %v283 = vunpack.c.h.b16 %v92
  %v284 = vunpack.c.l.b16 %v93
  %v285 = vunpack.c.h.b16 %v93
  %v286 = vpack.c.b16 %v196, %v190
  %v287 = vpack.c.b16 %v197, %v191
  %v288 = vpack.c.b16 %v198, %v192
  %v289 = vpack.c.b16 %v199, %v193
  %v290 = vpack.c.b16 %v200, %v194
  %v291 = vpack.c.b16 %v201, %v195
  %v292 = vpack.c.b16 %v208, %v202
  %v293 = vpack.c.b16 %v209, %v203
  %v294 = vpack.c.b16 %v210, %v204
  %v295 = vpack.c.b16 %v211, %v205
  %v296 = vpack.c.b16 %v212, %v206
  %v297 = vpack.c.b16 %v213, %v207
  %v298 = vpack.c.b16 %v220, %v214
  %v299 = vpack.c.b16 %v221, %v215
  %v300 = vpack.c.b16 %v222, %v216
  %v301 = vpack.c.b16 %v223, %v217
  %v302 = vpack.c.b16 %v224, %v218
  %v303 = vpack.c.b16 %v225, %v219
  %v304 = vpack.c.b16 %v232, %v226
  %v305 = vpack.c.b16 %v233, %v227
  %v306 = vpack.c.b16 %v234, %v228
  %v307 = vpack.c.b16 %v235, %v229
  %v308 = vpack.c.b16 %v236, %v230
  %v309 = vpack.c.b16 %v237, %v231
  %v310 = vpack.c.b16 %v244, %v238
  %v311 = vpack.c.b16 %v245, %v239
  %v312 = vpack.c.b16 %v246, %v240
  %v313 = vpack.c.b16 %v247, %v241
  %v314 = vpack.c.b16 %v248, %v242
  %v315 = vpack.c.b16 %v249, %v243
  %v316 = vpack.c.b16 %v256, %v250
  %v317 = vpack.c.b16 %v257, %v251
  %v318 = vpack.c.b16 %v258, %v252
  %v319 = vpack.c.b16 %v259, %v253
  %v320 = vpack.c.b16 %v260, %v254
  %v321 = vpack.c.b16 %v261, %v255
  %v322 = vpack.c.b16 %v268, %v262
  %v323 = vpack.c.b16 %v269, %v263
  %v324 = vpack.c.b16 %v270, %v264
  %v325 = vpack.c.b16 %v271, %v265
  %v326 = vpack.c.b16 %v272, %v266
  %v327 = vpack.c.b16 %v273, %v267
  %v328 = vpack.c.b16 %v280, %v274
  %v329 = vpack.c.b16 %v281, %v275
  %v330 = vpack.c.b16 %v282, %v276
  %v331 = vpack.c.b16 %v283, %v277
  %v332 = vpack.c.b16 %v284, %v278
  %v333 = vpack.c.b16 %v285, %v279
  %382 = vmatpush.bf16.msra.mxu0 %v328
  %383 = vmatpush.bf16.msra.mxu0 %v322
  %384 = vmatpush.bf16.msra.mxu0 %v316
  %385 = vmatpush.bf16.msra.mxu0 %v310
  %386 = vmatpush.bf16.msra.mxu0 %v304
  %387 = vmatpush.bf16.msra.mxu0 %v298
  %388 = vmatpush.bf16.msra.mxu0 %v292
  %389 = vmatpush.bf16.msra.mxu0 %v286
  %390 = vmatmul.bf16.gmra.mxu0 %v126
  %v391 = vpop.f32.mrf.mxu0
  %v392 = vadd.f32 0.0, %v391
  %v393 = vpop.f32.mrf.mxu0
  %v394 = vadd.f32 0.0, %v393
  %395 = vmatmul.bf16.gmra.mxu0 %v127
  %v396 = vpop.f32.mrf.mxu0
  %v397 = vadd.f32 0.0, %v396
  %v398 = vpop.f32.mrf.mxu0
  %v399 = vadd.f32 0.0, %v398
  %400 = vmatmul.bf16.gmra.mxu0 %v128
  %v401 = vpop.f32.mrf.mxu0
  %v402 = vadd.f32 0.0, %v401
  %v403 = vpop.f32.mrf.mxu0
  %v404 = vadd.f32 0.0, %v403
  %405 = vmatmul.bf16.gmra.mxu0 %v129
  %v406 = vpop.f32.mrf.mxu0
  %v407 = vadd.f32 0.0, %v406
  %v408 = vpop.f32.mrf.mxu0
  %v409 = vadd.f32 0.0, %v408
  %410 = vmatmul.bf16.gmra.mxu0 %v130
  %v411 = vpop.f32.mrf.mxu0
  %v412 = vadd.f32 0.0, %v411
  %v413 = vpop.f32.mrf.mxu0
  %v414 = vadd.f32 0.0, %v413
  %415 = vmatmul.bf16.gmra.mxu0 %v131
  %v416 = vpop.f32.mrf.mxu0
  %v417 = vadd.f32 0.0, %v416
  %v418 = vpop.f32.mrf.mxu0
  %v419 = vadd.f32 0.0, %v418
  %420 = vmatmul.bf16.gmra.mxu0 %v132
  %v421 = vpop.f32.mrf.mxu0
  %v422 = vadd.f32 0.0, %v421
  %v423 = vpop.f32.mrf.mxu0
  %v424 = vadd.f32 0.0, %v423
  %425 = vmatmul.bf16.gmra.mxu0 %v133
  %v426 = vpop.f32.mrf.mxu0
  %v427 = vadd.f32 0.0, %v426
  %v428 = vpop.f32.mrf.mxu0
  %v429 = vadd.f32 0.0, %v428
  %430 = vdwg.mxu0
  %431 = vmatpush.bf16.msra.mxu0 %v329
  %432 = vmatpush.bf16.msra.mxu0 %v323
  %433 = vmatpush.bf16.msra.mxu0 %v317
  %434 = vmatpush.bf16.msra.mxu0 %v311
  %435 = vmatpush.bf16.msra.mxu0 %v305
  %436 = vmatpush.bf16.msra.mxu0 %v299
  %437 = vmatpush.bf16.msra.mxu0 %v293
  %438 = vmatpush.bf16.msra.mxu0 %v287
  %439 = vmatmul.bf16.gmra.mxu0 %v126
  %v440 = vpop.f32.mrf.mxu0
  %v441 = vadd.f32 0.0, %v440
  %v442 = vpop.f32.mrf.mxu0
  %v443 = vadd.f32 0.0, %v442
  %444 = vmatmul.bf16.gmra.mxu0 %v127
  %v445 = vpop.f32.mrf.mxu0
  %v446 = vadd.f32 0.0, %v445
  %v447 = vpop.f32.mrf.mxu0
  %v448 = vadd.f32 0.0, %v447
  %449 = vmatmul.bf16.gmra.mxu0 %v128
  %v450 = vpop.f32.mrf.mxu0
  %v451 = vadd.f32 0.0, %v450
  %v452 = vpop.f32.mrf.mxu0
  %v453 = vadd.f32 0.0, %v452
  %454 = vmatmul.bf16.gmra.mxu0 %v129
  %v455 = vpop.f32.mrf.mxu0
  %v456 = vadd.f32 0.0, %v455
  %v457 = vpop.f32.mrf.mxu0
  %v458 = vadd.f32 0.0, %v457
  %459 = vmatmul.bf16.gmra.mxu0 %v130
  %v460 = vpop.f32.mrf.mxu0
  %v461 = vadd.f32 0.0, %v460
  %v462 = vpop.f32.mrf.mxu0
  %v463 = vadd.f32 0.0, %v462
  %464 = vmatmul.bf16.gmra.mxu0 %v131
  %v465 = vpop.f32.mrf.mxu0
  %v466 = vadd.f32 0.0, %v465
  %v467 = vpop.f32.mrf.mxu0
  %v468 = vadd.f32 0.0, %v467
  %469 = vmatmul.bf16.gmra.mxu0 %v132
  %v470 = vpop.f32.mrf.mxu0
  %v471 = vadd.f32 0.0, %v470
  %v472 = vpop.f32.mrf.mxu0
  %v473 = vadd.f32 0.0, %v472
  %474 = vmatmul.bf16.gmra.mxu0 %v133
  %v475 = vpop.f32.mrf.mxu0
  %v476 = vadd.f32 0.0, %v475
  %v477 = vpop.f32.mrf.mxu0
  %v478 = vadd.f32 0.0, %v477
  %479 = vdwg.mxu0
  %480 = vmatpush.bf16.msra.mxu0 %v330
  %481 = vmatpush.bf16.msra.mxu0 %v324
  %482 = vmatpush.bf16.msra.mxu0 %v318
  %483 = vmatpush.bf16.msra.mxu0 %v312
  %484 = vmatpush.bf16.msra.mxu0 %v306
  %485 = vmatpush.bf16.msra.mxu0 %v300
  %486 = vmatpush.bf16.msra.mxu0 %v294
  %487 = vmatpush.bf16.msra.mxu0 %v288
  %488 = vmatmul.bf16.gmra.mxu0 %v126
  %v489 = vpop.f32.mrf.mxu0
  %v490 = vadd.f32 0.0, %v489
  %v491 = vpop.f32.mrf.mxu0
  %v492 = vadd.f32 0.0, %v491
  %493 = vmatmul.bf16.gmra.mxu0 %v127
  %v494 = vpop.f32.mrf.mxu0
  %v495 = vadd.f32 0.0, %v494
  %v496 = vpop.f32.mrf.mxu0
  %v497 = vadd.f32 0.0, %v496
  %498 = vmatmul.bf16.gmra.mxu0 %v128
  %v499 = vpop.f32.mrf.mxu0
  %v500 = vadd.f32 0.0, %v499
  %v501 = vpop.f32.mrf.mxu0
  %v502 = vadd.f32 0.0, %v501
  %503 = vmatmul.bf16.gmra.mxu0 %v129
  %v504 = vpop.f32.mrf.mxu0
  %v505 = vadd.f32 0.0, %v504
  %v506 = vpop.f32.mrf.mxu0
  %v507 = vadd.f32 0.0, %v506
  %508 = vmatmul.bf16.gmra.mxu0 %v130
  %v509 = vpop.f32.mrf.mxu0
  %v510 = vadd.f32 0.0, %v509
  %v511 = vpop.f32.mrf.mxu0
  %v512 = vadd.f32 0.0, %v511
  %513 = vmatmul.bf16.gmra.mxu0 %v131
  %v514 = vpop.f32.mrf.mxu0
  %v515 = vadd.f32 0.0, %v514
  %v516 = vpop.f32.mrf.mxu0
  %v517 = vadd.f32 0.0, %v516
  %518 = vmatmul.bf16.gmra.mxu0 %v132
  %v519 = vpop.f32.mrf.mxu0
  %v520 = vadd.f32 0.0, %v519
  %v521 = vpop.f32.mrf.mxu0
  %v522 = vadd.f32 0.0, %v521
  %523 = vmatmul.bf16.gmra.mxu0 %v133
  %v524 = vpop.f32.mrf.mxu0
  %v525 = vadd.f32 0.0, %v524
  %v526 = vpop.f32.mrf.mxu0
  %v527 = vadd.f32 0.0, %v526
  %528 = vdwg.mxu0
  %529 = vmatpush.bf16.msra.mxu0 %v331
  %530 = vmatpush.bf16.msra.mxu0 %v325
  %531 = vmatpush.bf16.msra.mxu0 %v319
  %532 = vmatpush.bf16.msra.mxu0 %v313
  %533 = vmatpush.bf16.msra.mxu0 %v307
  %534 = vmatpush.bf16.msra.mxu0 %v301
  %535 = vmatpush.bf16.msra.mxu0 %v295
  %536 = vmatpush.bf16.msra.mxu0 %v289
  %537 = vmatmul.bf16.gmra.mxu0 %v126
  %v538 = vpop.f32.mrf.mxu0
  %v539 = vadd.f32 0.0, %v538
  %v540 = vpop.f32.mrf.mxu0
  %v541 = vadd.f32 0.0, %v540
  %542 = vmatmul.bf16.gmra.mxu0 %v127
  %v543 = vpop.f32.mrf.mxu0
  %v544 = vadd.f32 0.0, %v543
  %v545 = vpop.f32.mrf.mxu0
  %v546 = vadd.f32 0.0, %v545
  %547 = vmatmul.bf16.gmra.mxu0 %v128
  %v548 = vpop.f32.mrf.mxu0
  %v549 = vadd.f32 0.0, %v548
  %v550 = vpop.f32.mrf.mxu0
  %v551 = vadd.f32 0.0, %v550
  %552 = vmatmul.bf16.gmra.mxu0 %v129
  %v553 = vpop.f32.mrf.mxu0
  %v554 = vadd.f32 0.0, %v553
  %v555 = vpop.f32.mrf.mxu0
  %v556 = vadd.f32 0.0, %v555
  %557 = vmatmul.bf16.gmra.mxu0 %v130
  %v558 = vpop.f32.mrf.mxu0
  %v559 = vadd.f32 0.0, %v558
  %v560 = vpop.f32.mrf.mxu0
  %v561 = vadd.f32 0.0, %v560
  %562 = vmatmul.bf16.gmra.mxu0 %v131
  %v563 = vpop.f32.mrf.mxu0
  %v564 = vadd.f32 0.0, %v563
  %v565 = vpop.f32.mrf.mxu0
  %v566 = vadd.f32 0.0, %v565
  %567 = vmatmul.bf16.gmra.mxu0 %v132
  %v568 = vpop.f32.mrf.mxu0
  %v569 = vadd.f32 0.0, %v568
  %v570 = vpop.f32.mrf.mxu0
  %v571 = vadd.f32 0.0, %v570
  %572 = vmatmul.bf16.gmra.mxu0 %v133
  %v573 = vpop.f32.mrf.mxu0
  %v574 = vadd.f32 0.0, %v573
  %v575 = vpop.f32.mrf.mxu0
  %v576 = vadd.f32 0.0, %v575
  %577 = vdwg.mxu0
  %578 = vmatpush.bf16.msra.mxu0 %v332
  %579 = vmatpush.bf16.msra.mxu0 %v326
  %580 = vmatpush.bf16.msra.mxu0 %v320
  %581 = vmatpush.bf16.msra.mxu0 %v314
  %582 = vmatpush.bf16.msra.mxu0 %v308
  %583 = vmatpush.bf16.msra.mxu0 %v302
  %584 = vmatpush.bf16.msra.mxu0 %v296
  %585 = vmatpush.bf16.msra.mxu0 %v290
  %586 = vmatmul.bf16.gmra.mxu0 %v126
  %v587 = vpop.f32.mrf.mxu0
  %v588 = vadd.f32 0.0, %v587
  %v589 = vpop.f32.mrf.mxu0
  %v590 = vadd.f32 0.0, %v589
  %591 = vmatmul.bf16.gmra.mxu0 %v127
  %v592 = vpop.f32.mrf.mxu0
  %v593 = vadd.f32 0.0, %v592
  %v594 = vpop.f32.mrf.mxu0
  %v595 = vadd.f32 0.0, %v594
  %596 = vmatmul.bf16.gmra.mxu0 %v128
  %v597 = vpop.f32.mrf.mxu0
  %v598 = vadd.f32 0.0, %v597
  %v599 = vpop.f32.mrf.mxu0
  %v600 = vadd.f32 0.0, %v599
  %601 = vmatmul.bf16.gmra.mxu0 %v129
  %v602 = vpop.f32.mrf.mxu0
  %v603 = vadd.f32 0.0, %v602
  %v604 = vpop.f32.mrf.mxu0
  %v605 = vadd.f32 0.0, %v604
  %606 = vmatmul.bf16.gmra.mxu0 %v130
  %v607 = vpop.f32.mrf.mxu0
  %v608 = vadd.f32 0.0, %v607
  %v609 = vpop.f32.mrf.mxu0
  %v610 = vadd.f32 0.0, %v609
  %611 = vmatmul.bf16.gmra.mxu0 %v131
  %v612 = vpop.f32.mrf.mxu0
  %v613 = vadd.f32 0.0, %v612
  %v614 = vpop.f32.mrf.mxu0
  %v615 = vadd.f32 0.0, %v614
  %616 = vmatmul.bf16.gmra.mxu0 %v132
  %v617 = vpop.f32.mrf.mxu0
  %v618 = vadd.f32 0.0, %v617
  %v619 = vpop.f32.mrf.mxu0
  %v620 = vadd.f32 0.0, %v619
  %621 = vmatmul.bf16.gmra.mxu0 %v133
  %v622 = vpop.f32.mrf.mxu0
  %v623 = vadd.f32 0.0, %v622
  %v624 = vpop.f32.mrf.mxu0
  %v625 = vadd.f32 0.0, %v624
  %626 = vdwg.mxu0
  %627 = vmatpush.bf16.msra.mxu0 %v333
  %628 = vmatpush.bf16.msra.mxu0 %v327
  %629 = vmatpush.bf16.msra.mxu0 %v321
  %630 = vmatpush.bf16.msra.mxu0 %v315
  %631 = vmatpush.bf16.msra.mxu0 %v309
  %632 = vmatpush.bf16.msra.mxu0 %v303
  %633 = vmatpush.bf16.msra.mxu0 %v297
  %634 = vmatpush.bf16.msra.mxu0 %v291
  %635 = vmatmul.bf16.gmra.mxu0 %v126
  %v636 = vpop.f32.mrf.mxu0
  %v637 = vadd.f32 0.0, %v636
  %v638 = vpop.f32.mrf.mxu0
  %v639 = vadd.f32 0.0, %v638
  %640 = vmatmul.bf16.gmra.mxu0 %v127
  %v641 = vpop.f32.mrf.mxu0
  %v642 = vadd.f32 0.0, %v641
  %v643 = vpop.f32.mrf.mxu0
  %v644 = vadd.f32 0.0, %v643
  %645 = vmatmul.bf16.gmra.mxu0 %v128
  %v646 = vpop.f32.mrf.mxu0
  %v647 = vadd.f32 0.0, %v646
  %v648 = vpop.f32.mrf.mxu0
  %v649 = vadd.f32 0.0, %v648
  %650 = vmatmul.bf16.gmra.mxu0 %v129
  %v651 = vpop.f32.mrf.mxu0
  %v652 = vadd.f32 0.0, %v651
  %v653 = vpop.f32.mrf.mxu0
  %v654 = vadd.f32 0.0, %v653
  %655 = vmatmul.bf16.gmra.mxu0 %v130
  %v656 = vpop.f32.mrf.mxu0
  %v657 = vadd.f32 0.0, %v656
  %v658 = vpop.f32.mrf.mxu0
  %v659 = vadd.f32 0.0, %v658
  %660 = vmatmul.bf16.gmra.mxu0 %v131
  %v661 = vpop.f32.mrf.mxu0
  %v662 = vadd.f32 0.0, %v661
  %v663 = vpop.f32.mrf.mxu0
  %v664 = vadd.f32 0.0, %v663
  %665 = vmatmul.bf16.gmra.mxu0 %v132
  %v666 = vpop.f32.mrf.mxu0
  %v667 = vadd.f32 0.0, %v666
  %v668 = vpop.f32.mrf.mxu0
  %v669 = vadd.f32 0.0, %v668
  %670 = vmatmul.bf16.gmra.mxu0 %v133
  %v671 = vpop.f32.mrf.mxu0
  %v672 = vadd.f32 0.0, %v671
  %v673 = vpop.f32.mrf.mxu0
  %v674 = vadd.f32 0.0, %v673
  %675 = vdwg.mxu0
  %v676 = vld [vmem:[#allocation2] sm:$0xff]
  %v677 = vld [vmem:[#allocation2 + $0x8] sm:$0xff]
  %v678 = vld [vmem:[#allocation2 + $0x10] sm:$0xff]
  %v679 = vld [vmem:[#allocation2 + $0x18] sm:$0xff]
  %v680 = vld [vmem:[#allocation2 + $0x20] sm:$0xff]
  %v681 = vld [vmem:[#allocation2 + $0x28] sm:$0xff]
  %v682 = vadd.f32 %v392, %v394
  %v683 = vrot.slane %v682, 4
  %v684 = vadd.f32 %v682, %v683
  %v685 = vrot.slane %v684, 2
  %v686 = vadd.f32 %v684, %v685
  %v687 = vrot.slane %v686, 1
  %v688 = vadd.f32 %v686, %v687
  %v689 = vadd.f32 %v441, %v443
  %v690 = vrot.slane %v689, 4
  %v691 = vadd.f32 %v689, %v690
  %v692 = vrot.slane %v691, 2
  %v693 = vadd.f32 %v691, %v692
  %v694 = vrot.slane %v693, 1
  %v695 = vadd.f32 %v693, %v694
  %v696 = vadd.f32 %v490, %v492
  %v697 = vrot.slane %v696, 4
  %v698 = vadd.f32 %v696, %v697
  %v699 = vrot.slane %v698, 2
  %v700 = vadd.f32 %v698, %v699
  %v701 = vrot.slane %v700, 1
  %v702 = vadd.f32 %v700, %v701
  %v703 = vadd.f32 %v539, %v541
  %v704 = vrot.slane %v703, 4
  %v705 = vadd.f32 %v703, %v704
  %v706 = vrot.slane %v705, 2
  %v707 = vadd.f32 %v705, %v706
  %v708 = vrot.slane %v707, 1
  %v709 = vadd.f32 %v707, %v708
  %v710 = vadd.f32 %v588, %v590
  %v711 = vrot.slane %v710, 4
  %v712 = vadd.f32 %v710, %v711
  %v713 = vrot.slane %v712, 2
  %v714 = vadd.f32 %v712, %v713
  %v715 = vrot.slane %v714, 1
  %v716 = vadd.f32 %v714, %v715
  %v717 = vadd.f32 %v637, %v639
  %v718 = vrot.slane %v717, 4
  %v719 = vadd.f32 %v717, %v718
  %v720 = vrot.slane %v719, 2
  %v721 = vadd.f32 %v719, %v720
  %v722 = vrot.slane %v721, 1
  %v723 = vadd.f32 %v721, %v722
  %v724 = vadd.f32 %v397, %v399
  %v725 = vrot.slane %v724, 4
  %v726 = vadd.f32 %v724, %v725
  %v727 = vrot.slane %v726, 2
  %v728 = vadd.f32 %v726, %v727
  %v729 = vrot.slane %v728, 1
  %v730 = vadd.f32 %v728, %v729
  %v731 = vadd.f32 %v446, %v448
  %v732 = vrot.slane %v731, 4
  %v733 = vadd.f32 %v731, %v732
  %v734 = vrot.slane %v733, 2
  %v735 = vadd.f32 %v733, %v734
  %v736 = vrot.slane %v735, 1
  %v737 = vadd.f32 %v735, %v736
  %v738 = vadd.f32 %v495, %v497
  %v739 = vrot.slane %v738, 4
  %v740 = vadd.f32 %v738, %v739
  %v741 = vrot.slane %v740, 2
  %v742 = vadd.f32 %v740, %v741
  %v743 = vrot.slane %v742, 1
  %v744 = vadd.f32 %v742, %v743
  %v745 = vadd.f32 %v544, %v546
  %v746 = vrot.slane %v745, 4
  %v747 = vadd.f32 %v745, %v746
  %v748 = vrot.slane %v747, 2
  %v749 = vadd.f32 %v747, %v748
  %v750 = vrot.slane %v749, 1
  %v751 = vadd.f32 %v749, %v750
  %v752 = vadd.f32 %v593, %v595
  %v753 = vrot.slane %v752, 4
  %v754 = vadd.f32 %v752, %v753
  %v755 = vrot.slane %v754, 2
  %v756 = vadd.f32 %v754, %v755
  %v757 = vrot.slane %v756, 1
  %v758 = vadd.f32 %v756, %v757
  %v759 = vadd.f32 %v642, %v644
  %v760 = vrot.slane %v759, 4
  %v761 = vadd.f32 %v759, %v760
  %v762 = vrot.slane %v761, 2
  %v763 = vadd.f32 %v761, %v762
  %v764 = vrot.slane %v763, 1
  %v765 = vadd.f32 %v763, %v764
  %v766 = vadd.f32 %v402, %v404
  %v767 = vrot.slane %v766, 4
  %v768 = vadd.f32 %v766, %v767
  %v769 = vrot.slane %v768, 2
  %v770 = vadd.f32 %v768, %v769
  %v771 = vrot.slane %v770, 1
  %v772 = vadd.f32 %v770, %v771
  %v773 = vadd.f32 %v451, %v453
  %v774 = vrot.slane %v773, 4
  %v775 = vadd.f32 %v773, %v774
  %v776 = vrot.slane %v775, 2
  %v777 = vadd.f32 %v775, %v776
  %v778 = vrot.slane %v777, 1
  %v779 = vadd.f32 %v777, %v778
  %v780 = vadd.f32 %v500, %v502
  %v781 = vrot.slane %v780, 4
  %v782 = vadd.f32 %v780, %v781
  %v783 = vrot.slane %v782, 2
  %v784 = vadd.f32 %v782, %v783
  %v785 = vrot.slane %v784, 1
  %v786 = vadd.f32 %v784, %v785
  %v787 = vadd.f32 %v549, %v551
  %v788 = vrot.slane %v787, 4
  %v789 = vadd.f32 %v787, %v788
  %v790 = vrot.slane %v789, 2
  %v791 = vadd.f32 %v789, %v790
  %v792 = vrot.slane %v791, 1
  %v793 = vadd.f32 %v791, %v792
  %v794 = vadd.f32 %v598, %v600
  %v795 = vrot.slane %v794, 4
  %v796 = vadd.f32 %v794, %v795
  %v797 = vrot.slane %v796, 2
  %v798 = vadd.f32 %v796, %v797
  %v799 = vrot.slane %v798, 1
  %v800 = vadd.f32 %v798, %v799
  %v801 = vadd.f32 %v647, %v649
  %v802 = vrot.slane %v801, 4
  %v803 = vadd.f32 %v801, %v802
  %v804 = vrot.slane %v803, 2
  %v805 = vadd.f32 %v803, %v804
  %v806 = vrot.slane %v805, 1
  %v807 = vadd.f32 %v805, %v806
  %v808 = vadd.f32 %v407, %v409
  %v809 = vrot.slane %v808, 4
  %v810 = vadd.f32 %v808, %v809
  %v811 = vrot.slane %v810, 2
  %v812 = vadd.f32 %v810, %v811
  %v813 = vrot.slane %v812, 1
  %v814 = vadd.f32 %v812, %v813
  %v815 = vadd.f32 %v456, %v458
  %v816 = vrot.slane %v815, 4
  %v817 = vadd.f32 %v815, %v816
  %v818 = vrot.slane %v817, 2
  %v819 = vadd.f32 %v817, %v818
  %v820 = vrot.slane %v819, 1
  %v821 = vadd.f32 %v819, %v820
  %v822 = vadd.f32 %v505, %v507
  %v823 = vrot.slane %v822, 4
  %v824 = vadd.f32 %v822, %v823
  %v825 = vrot.slane %v824, 2
  %v826 = vadd.f32 %v824, %v825
  %v827 = vrot.slane %v826, 1
  %v828 = vadd.f32 %v826, %v827
  %v829 = vadd.f32 %v554, %v556
  %v830 = vrot.slane %v829, 4
  %v831 = vadd.f32 %v829, %v830
  %v832 = vrot.slane %v831, 2
  %v833 = vadd.f32 %v831, %v832
  %v834 = vrot.slane %v833, 1
  %v835 = vadd.f32 %v833, %v834
  %v836 = vadd.f32 %v603, %v605
  %v837 = vrot.slane %v836, 4
  %v838 = vadd.f32 %v836, %v837
  %v839 = vrot.slane %v838, 2
  %v840 = vadd.f32 %v838, %v839
  %v841 = vrot.slane %v840, 1
  %v842 = vadd.f32 %v840, %v841
  %v843 = vadd.f32 %v652, %v654
  %v844 = vrot.slane %v843, 4
  %v845 = vadd.f32 %v843, %v844
  %v846 = vrot.slane %v845, 2
  %v847 = vadd.f32 %v845, %v846
  %v848 = vrot.slane %v847, 1
  %v849 = vadd.f32 %v847, %v848
  %v850 = vadd.f32 %v412, %v414
  %v851 = vrot.slane %v850, 4
  %v852 = vadd.f32 %v850, %v851
  %v853 = vrot.slane %v852, 2
  %v854 = vadd.f32 %v852, %v853
  %v855 = vrot.slane %v854, 1
  %v856 = vadd.f32 %v854, %v855
  %v857 = vadd.f32 %v461, %v463
  %v858 = vrot.slane %v857, 4
  %v859 = vadd.f32 %v857, %v858
  %v860 = vrot.slane %v859, 2
  %v861 = vadd.f32 %v859, %v860
  %v862 = vrot.slane %v861, 1
  %v863 = vadd.f32 %v861, %v862
  %v864 = vadd.f32 %v510, %v512
  %v865 = vrot.slane %v864, 4
  %v866 = vadd.f32 %v864, %v865
  %v867 = vrot.slane %v866, 2
  %v868 = vadd.f32 %v866, %v867
  %v869 = vrot.slane %v868, 1
  %v870 = vadd.f32 %v868, %v869
  %v871 = vadd.f32 %v559, %v561
  %v872 = vrot.slane %v871, 4
  %v873 = vadd.f32 %v871, %v872
  %v874 = vrot.slane %v873, 2
  %v875 = vadd.f32 %v873, %v874
  %v876 = vrot.slane %v875, 1
  %v877 = vadd.f32 %v875, %v876
  %v878 = vadd.f32 %v608, %v610
  %v879 = vrot.slane %v878, 4
  %v880 = vadd.f32 %v878, %v879
  %v881 = vrot.slane %v880, 2
  %v882 = vadd.f32 %v880, %v881
  %v883 = vrot.slane %v882, 1
  %v884 = vadd.f32 %v882, %v883
  %v885 = vadd.f32 %v657, %v659
  %v886 = vrot.slane %v885, 4
  %v887 = vadd.f32 %v885, %v886
  %v888 = vrot.slane %v887, 2
  %v889 = vadd.f32 %v887, %v888
  %v890 = vrot.slane %v889, 1
  %v891 = vadd.f32 %v889, %v890
  %v892 = vadd.f32 %v417, %v419
  %v893 = vrot.slane %v892, 4
  %v894 = vadd.f32 %v892, %v893
  %v895 = vrot.slane %v894, 2
  %v896 = vadd.f32 %v894, %v895
  %v897 = vrot.slane %v896, 1
  %v898 = vadd.f32 %v896, %v897
  %v899 = vadd.f32 %v466, %v468
  %v900 = vrot.slane %v899, 4
  %v901 = vadd.f32 %v899, %v900
  %v902 = vrot.slane %v901, 2
  %v903 = vadd.f32 %v901, %v902
  %v904 = vrot.slane %v903, 1
  %v905 = vadd.f32 %v903, %v904
  %v906 = vadd.f32 %v515, %v517
  %v907 = vrot.slane %v906, 4
  %v908 = vadd.f32 %v906, %v907
  %v909 = vrot.slane %v908, 2
  %v910 = vadd.f32 %v908, %v909
  %v911 = vrot.slane %v910, 1
  %v912 = vadd.f32 %v910, %v911
  %v913 = vadd.f32 %v564, %v566
  %v914 = vrot.slane %v913, 4
  %v915 = vadd.f32 %v913, %v914
  %v916 = vrot.slane %v915, 2
  %v917 = vadd.f32 %v915, %v916
  %v918 = vrot.slane %v917, 1
  %v919 = vadd.f32 %v917, %v918
  %v920 = vadd.f32 %v613, %v615
  %v921 = vrot.slane %v920, 4
  %v922 = vadd.f32 %v920, %v921
  %v923 = vrot.slane %v922, 2
  %v924 = vadd.f32 %v922, %v923
  %v925 = vrot.slane %v924, 1
  %v926 = vadd.f32 %v924, %v925
  %v927 = vadd.f32 %v662, %v664
  %v928 = vrot.slane %v927, 4
  %v929 = vadd.f32 %v927, %v928
  %v930 = vrot.slane %v929, 2
  %v931 = vadd.f32 %v929, %v930
  %v932 = vrot.slane %v931, 1
  %v933 = vadd.f32 %v931, %v932
  %v934 = vadd.f32 %v422, %v424
  %v935 = vrot.slane %v934, 4
  %v936 = vadd.f32 %v934, %v935
  %v937 = vrot.slane %v936, 2
  %v938 = vadd.f32 %v936, %v937
  %v939 = vrot.slane %v938, 1
  %v940 = vadd.f32 %v938, %v939
  %v941 = vadd.f32 %v471, %v473
  %v942 = vrot.slane %v941, 4
  %v943 = vadd.f32 %v941, %v942
  %v944 = vrot.slane %v943, 2
  %v945 = vadd.f32 %v943, %v944
  %v946 = vrot.slane %v945, 1
  %v947 = vadd.f32 %v945, %v946
  %v948 = vadd.f32 %v520, %v522
  %v949 = vrot.slane %v948, 4
  %v950 = vadd.f32 %v948, %v949
  %v951 = vrot.slane %v950, 2
  %v952 = vadd.f32 %v950, %v951
  %v953 = vrot.slane %v952, 1
  %v954 = vadd.f32 %v952, %v953
  %v955 = vadd.f32 %v569, %v571
  %v956 = vrot.slane %v955, 4
  %v957 = vadd.f32 %v955, %v956
  %v958 = vrot.slane %v957, 2
  %v959 = vadd.f32 %v957, %v958
  %v960 = vrot.slane %v959, 1
  %v961 = vadd.f32 %v959, %v960
  %v962 = vadd.f32 %v618, %v620
  %v963 = vrot.slane %v962, 4
  %v964 = vadd.f32 %v962, %v963
  %v965 = vrot.slane %v964, 2
  %v966 = vadd.f32 %v964, %v965
  %v967 = vrot.slane %v966, 1
  %v968 = vadd.f32 %v966, %v967
  %v969 = vadd.f32 %v667, %v669
  %v970 = vrot.slane %v969, 4
  %v971 = vadd.f32 %v969, %v970
  %v972 = vrot.slane %v971, 2
  %v973 = vadd.f32 %v971, %v972
  %v974 = vrot.slane %v973, 1
  %v975 = vadd.f32 %v973, %v974
  %v976 = vadd.f32 %v427, %v429
  %v977 = vrot.slane %v976, 4
  %v978 = vadd.f32 %v976, %v977
  %v979 = vrot.slane %v978, 2
  %v980 = vadd.f32 %v978, %v979
  %v981 = vrot.slane %v980, 1
  %v982 = vadd.f32 %v980, %v981
  %v983 = vadd.f32 %v476, %v478
  %v984 = vrot.slane %v983, 4
  %v985 = vadd.f32 %v983, %v984
  %v986 = vrot.slane %v985, 2
  %v987 = vadd.f32 %v985, %v986
  %v988 = vrot.slane %v987, 1
  %v989 = vadd.f32 %v987, %v988
  %v990 = vadd.f32 %v525, %v527
  %v991 = vrot.slane %v990, 4
  %v992 = vadd.f32 %v990, %v991
  %v993 = vrot.slane %v992, 2
  %v994 = vadd.f32 %v992, %v993
  %v995 = vrot.slane %v994, 1
  %v996 = vadd.f32 %v994, %v995
  %v997 = vadd.f32 %v574, %v576
  %v998 = vrot.slane %v997, 4
  %v999 = vadd.f32 %v997, %v998
  %v1000 = vrot.slane %v999, 2
  %v1001 = vadd.f32 %v999, %v1000
  %v1002 = vrot.slane %v1001, 1
  %v1003 = vadd.f32 %v1001, %v1002
  %v1004 = vadd.f32 %v623, %v625
  %v1005 = vrot.slane %v1004, 4
  %v1006 = vadd.f32 %v1004, %v1005
  %v1007 = vrot.slane %v1006, 2
  %v1008 = vadd.f32 %v1006, %v1007
  %v1009 = vrot.slane %v1008, 1
  %v1010 = vadd.f32 %v1008, %v1009
  %v1011 = vadd.f32 %v672, %v674
  %v1012 = vrot.slane %v1011, 4
  %v1013 = vadd.f32 %v1011, %v1012
  %v1014 = vrot.slane %v1013, 2
  %v1015 = vadd.f32 %v1013, %v1014
  %v1016 = vrot.slane %v1015, 1
  %v1017 = vadd.f32 %v1015, %v1016
  %vm1066 = vcmask 1041409
  %v1067 = vsel %vm1066, %v730, %v688
  %vm1068 = vcmask 1042434
  %v1069 = vsel %vm1068, %v772, %v1067
  %vm1070 = vcmask 1043459
  %v1071 = vsel %vm1070, %v814, %v1069
  %vm1072 = vcmask 1044484
  %v1073 = vsel %vm1072, %v856, %v1071
  %vm1074 = vcmask 1045509
  %v1075 = vsel %vm1074, %v898, %v1073
  %vm1076 = vcmask 1046534
  %v1077 = vsel %vm1076, %v940, %v1075
  %vm1078 = vcmask 1047559
  %v1079 = vsel %vm1078, %v982, %v1077
  %v1080 = vsel %vm1066, %v737, %v695
  %v1081 = vsel %vm1068, %v779, %v1080
  %v1082 = vsel %vm1070, %v821, %v1081
  %v1083 = vsel %vm1072, %v863, %v1082
  %v1084 = vsel %vm1074, %v905, %v1083
  %v1085 = vsel %vm1076, %v947, %v1084
  %v1086 = vsel %vm1078, %v989, %v1085
  %v1087 = vsel %vm1066, %v744, %v702
  %v1088 = vsel %vm1068, %v786, %v1087
  %v1089 = vsel %vm1070, %v828, %v1088
  %v1090 = vsel %vm1072, %v870, %v1089
  %v1091 = vsel %vm1074, %v912, %v1090
  %v1092 = vsel %vm1076, %v954, %v1091
  %v1093 = vsel %vm1078, %v996, %v1092
  %v1094 = vsel %vm1066, %v751, %v709
  %v1095 = vsel %vm1068, %v793, %v1094
  %v1096 = vsel %vm1070, %v835, %v1095
  %v1097 = vsel %vm1072, %v877, %v1096
  %v1098 = vsel %vm1074, %v919, %v1097
  %v1099 = vsel %vm1076, %v961, %v1098
  %v1100 = vsel %vm1078, %v1003, %v1099
  %v1101 = vsel %vm1066, %v758, %v716
  %v1102 = vsel %vm1068, %v800, %v1101
  %v1103 = vsel %vm1070, %v842, %v1102
  %v1104 = vsel %vm1072, %v884, %v1103
  %v1105 = vsel %vm1074, %v926, %v1104
  %v1106 = vsel %vm1076, %v968, %v1105
  %v1107 = vsel %vm1078, %v1010, %v1106
  %v1108 = vsel %vm1066, %v765, %v723
  %v1109 = vsel %vm1068, %v807, %v1108
  %v1110 = vsel %vm1070, %v849, %v1109
  %v1111 = vsel %vm1072, %v891, %v1110
  %v1112 = vsel %vm1074, %v933, %v1111
  %v1113 = vsel %vm1076, %v975, %v1112
  %v1114 = vsel %vm1078, %v1017, %v1113
  %v1121 = vadd.f32 %v676, %v1079
  %v1122 = vadd.f32 %v677, %v1086
  %v1123 = vadd.f32 %v678, %v1093
  %v1124 = vadd.f32 %v679, %v1100
  %v1125 = vadd.f32 %v680, %v1107
  %v1126 = vadd.f32 %v681, %v1114
  %1127 = vst [vmem:[#allocation2] sm:$0xff] %v1121
  %1128 = vst [vmem:[#allocation2 + $0x8] sm:$0xff] %v1122
  %1129 = vst [vmem:[#allocation2 + $0x10] sm:$0xff] %v1123
  %1130 = vst [vmem:[#allocation2 + $0x18] sm:$0xff] %v1124
  %1131 = vst [vmem:[#allocation2 + $0x20] sm:$0xff] %v1125
  %1132 = vst [vmem:[#allocation2 + $0x28] sm:$0xff] %v1126
  // Predicated region
  $region26: #{comparsion_models_forward.1} parent=0 // pred_check
    %p1133 = pneg %p20
  $region27: #{comparsion_models_forward.1} parent=0 // pred_check_branch
    %1135 = sbr.rel (%p1133) target = $region29
  $region28: #{comparsion_models_forward.1} parent=0 // pred_region
    %v1136 = vld [vmem:[#allocation2] sm:$0xff]
    %v1137 = vld [vmem:[#allocation2 + $0x8] sm:$0xff]
    %v1138 = vld [vmem:[#allocation2 + $0x10] sm:$0xff]
    %v1139 = vld [vmem:[#allocation2 + $0x18] sm:$0xff]
    %v1140 = vld [vmem:[#allocation2 + $0x20] sm:$0xff]
    %v1141 = vld [vmem:[#allocation2 + $0x28] sm:$0xff]
    %v1142 = vmul.f32 %v1136, 0.0625
    %v1143 = vmul.f32 %v1137, 0.0625
    %v1144 = vmul.f32 %v1138, 0.0625
    %v1145 = vmul.f32 %v1139, 0.0625
    %v1146 = vmul.f32 %v1140, 0.0625
    %v1147 = vmul.f32 %v1141, 0.0625
    %v1148 = vld [vmem:[%s2] sm:$0x3f]
    %v1150 = vperm.slane %v1148, 0
    %v1151 = vperm.slane %v1148, 1
    %v1152 = vperm.slane %v1148, 2
    %v1153 = vperm.slane %v1148, 3
    %v1154 = vperm.slane %v1148, 4
    %v1155 = vperm.slane %v1148, 5
    %v1162 = vadd.f32 %v1142, %v1150
    %v1163 = vadd.f32 %v1143, %v1151
    %v1164 = vadd.f32 %v1144, %v1152
    %v1165 = vadd.f32 %v1145, %v1153
    %v1166 = vadd.f32 %v1146, %v1154
    %v1167 = vadd.f32 %v1147, %v1155
    %v1168 = vpack.c.bf16 %v1162, %v1162
    %v1169 = vpack.c.bf16 %v1163, %v1163
    %v1170 = vpack.c.bf16 %v1164, %v1164
    %v1171 = vpack.c.bf16 %v1165, %v1165
    %v1172 = vpack.c.bf16 %v1166, %v1166
    %v1173 = vpack.c.bf16 %v1167, %v1167
    %v1174 = vld [vmem:[%s3] sm:$0xff]
    %v1175 = vld [vmem:[%s3 + $0x8] sm:$0xff]
    %v1176 = vld [vmem:[%s3 + $0x10] sm:$0xff]
    %v1177 = vld [vmem:[%s3 + $0x18] sm:$0xff]
    %v1178 = vld [vmem:[%s3 + $0x20] sm:$0xff]
    %v1179 = vld [vmem:[%s3 + $0x28] sm:$0xff]
    %v1180 = vld [vmem:[%s3 + $0x30] sm:$0xff]
    %v1181 = vld [vmem:[%s3 + $0x38] sm:$0xff]
    %v1182 = vld [vmem:[%s3 + $0x40] sm:$0xff]
    %v1183 = vld [vmem:[%s3 + $0x48] sm:$0xff]
    %v1184 = vld [vmem:[%s3 + $0x50] sm:$0xff]
    %v1185 = vld [vmem:[%s3 + $0x58] sm:$0xff]
    %v1186 = vld [vmem:[%s3 + $0x60] sm:$0xff]
    %v1187 = vld [vmem:[%s3 + $0x68] sm:$0xff]
    %v1188 = vld [vmem:[%s3 + $0x70] sm:$0xff]
    %v1189 = vld [vmem:[%s3 + $0x78] sm:$0xff]
    %v1190 = vld [vmem:[%s3 + $0x80] sm:$0xff]
    %v1191 = vld [vmem:[%s3 + $0x88] sm:$0xff]
    %v1192 = vld [vmem:[%s3 + $0x90] sm:$0xff]
    %v1193 = vld [vmem:[%s3 + $0x98] sm:$0xff]
    %v1194 = vld [vmem:[%s3 + $0xa0] sm:$0xff]
    %v1195 = vld [vmem:[%s3 + $0xa8] sm:$0xff]
    %v1196 = vld [vmem:[%s3 + $0xb0] sm:$0xff]
    %v1197 = vld [vmem:[%s3 + $0xb8] sm:$0xff]
    %v1198 = vld [vmem:[%s3 + $0xc0] sm:$0xff]
    %v1199 = vld [vmem:[%s3 + $0xc8] sm:$0xff]
    %v1200 = vld [vmem:[%s3 + $0xd0] sm:$0xff]
    %v1201 = vld [vmem:[%s3 + $0xd8] sm:$0xff]
    %v1202 = vld [vmem:[%s3 + $0xe0] sm:$0xff]
    %v1203 = vld [vmem:[%s3 + $0xe8] sm:$0xff]
    %v1204 = vld [vmem:[%s3 + $0xf0] sm:$0xff]
    %v1205 = vld [vmem:[%s3 + $0xf8] sm:$0xff]
    %v1206 = vld [vmem:[%s3 + $0x100] sm:$0xff]
    %v1207 = vld [vmem:[%s3 + $0x108] sm:$0xff]
    %v1208 = vld [vmem:[%s3 + $0x110] sm:$0xff]
    %v1209 = vld [vmem:[%s3 + $0x118] sm:$0xff]
    %v1210 = vld [vmem:[%s3 + $0x120] sm:$0xff]
    %v1211 = vld [vmem:[%s3 + $0x128] sm:$0xff]
    %v1212 = vld [vmem:[%s3 + $0x130] sm:$0xff]
    %v1213 = vld [vmem:[%s3 + $0x138] sm:$0xff]
    %v1214 = vld [vmem:[%s3 + $0x140] sm:$0xff]
    %v1215 = vld [vmem:[%s3 + $0x148] sm:$0xff]
    %v1216 = vld [vmem:[%s3 + $0x150] sm:$0xff]
    %v1217 = vld [vmem:[%s3 + $0x158] sm:$0xff]
    %v1218 = vld [vmem:[%s3 + $0x160] sm:$0xff]
    %v1219 = vld [vmem:[%s3 + $0x168] sm:$0xff]
    %v1220 = vld [vmem:[%s3 + $0x170] sm:$0xff]
    %v1221 = vld [vmem:[%s3 + $0x178] sm:$0xff]
    %v1222 = vld [vmem:[%s3 + $0x180] sm:$0xff]
    %v1223 = vld [vmem:[%s3 + $0x188] sm:$0xff]
    %v1224 = vld [vmem:[%s3 + $0x190] sm:$0xff]
    %v1225 = vld [vmem:[%s3 + $0x198] sm:$0xff]
    %v1226 = vld [vmem:[%s3 + $0x1a0] sm:$0xff]
    %v1227 = vld [vmem:[%s3 + $0x1a8] sm:$0xff]
    %v1228 = vld [vmem:[%s3 + $0x1b0] sm:$0xff]
    %v1229 = vld [vmem:[%s3 + $0x1b8] sm:$0xff]
    %v1230 = vld [vmem:[%s3 + $0x1c0] sm:$0xff]
    %v1231 = vld [vmem:[%s3 + $0x1c8] sm:$0xff]
    %v1232 = vld [vmem:[%s3 + $0x1d0] sm:$0xff]
    %v1233 = vld [vmem:[%s3 + $0x1d8] sm:$0xff]
    %v1234 = vld [vmem:[%s3 + $0x1e0] sm:$0xff]
    %v1235 = vld [vmem:[%s3 + $0x1e8] sm:$0xff]
    %v1236 = vld [vmem:[%s3 + $0x1f0] sm:$0xff]
    %v1237 = vld [vmem:[%s3 + $0x1f8] sm:$0xff]
    %v1238 = vld [vmem:[%s3 + $0x200] sm:$0xff]
    %v1239 = vld [vmem:[%s3 + $0x208] sm:$0xff]
    %v1240 = vld [vmem:[%s3 + $0x210] sm:$0xff]
    %v1241 = vld [vmem:[%s3 + $0x218] sm:$0xff]
    %v1242 = vld [vmem:[%s3 + $0x220] sm:$0xff]
    %v1243 = vld [vmem:[%s3 + $0x228] sm:$0xff]
    %v1244 = vld [vmem:[%s3 + $0x230] sm:$0xff]
    %v1245 = vld [vmem:[%s3 + $0x238] sm:$0xff]
    %v1246 = vld [vmem:[%s3 + $0x240] sm:$0xff]
    %v1247 = vld [vmem:[%s3 + $0x248] sm:$0xff]
    %v1248 = vld [vmem:[%s3 + $0x250] sm:$0xff]
    %v1249 = vld [vmem:[%s3 + $0x258] sm:$0xff]
    %v1250 = vld [vmem:[%s3 + $0x260] sm:$0xff]
    %v1251 = vld [vmem:[%s3 + $0x268] sm:$0xff]
    %v1252 = vld [vmem:[%s3 + $0x270] sm:$0xff]
    %v1253 = vld [vmem:[%s3 + $0x278] sm:$0xff]
    %v1254 = vld [vmem:[%s3 + $0x280] sm:$0xff]
    %v1255 = vld [vmem:[%s3 + $0x288] sm:$0xff]
    %v1256 = vld [vmem:[%s3 + $0x290] sm:$0xff]
    %v1257 = vld [vmem:[%s3 + $0x298] sm:$0xff]
    %v1258 = vld [vmem:[%s3 + $0x2a0] sm:$0xff]
    %v1259 = vld [vmem:[%s3 + $0x2a8] sm:$0xff]
    %v1260 = vld [vmem:[%s3 + $0x2b0] sm:$0xff]
    %v1261 = vld [vmem:[%s3 + $0x2b8] sm:$0xff]
    %v1262 = vld [vmem:[%s3 + $0x2c0] sm:$0xff]
    %v1263 = vld [vmem:[%s3 + $0x2c8] sm:$0xff]
    %v1264 = vld [vmem:[%s3 + $0x2d0] sm:$0xff]
    %v1265 = vld [vmem:[%s3 + $0x2d8] sm:$0xff]
    %v1266 = vld [vmem:[%s3 + $0x2e0] sm:$0xff]
    %v1267 = vld [vmem:[%s3 + $0x2e8] sm:$0xff]
    %v1268 = vld [vmem:[%s3 + $0x2f0] sm:$0xff]
    %v1269 = vld [vmem:[%s3 + $0x2f8] sm:$0xff]
    %v1270 = vld [vmem:[%s3 + $0x300] sm:$0xff]
    %v1271 = vld [vmem:[%s3 + $0x308] sm:$0xff]
    %v1272 = vld [vmem:[%s3 + $0x310] sm:$0xff]
    %v1273 = vld [vmem:[%s3 + $0x318] sm:$0xff]
    %v1274 = vld [vmem:[%s3 + $0x320] sm:$0xff]
    %v1275 = vld [vmem:[%s3 + $0x328] sm:$0xff]
    %v1276 = vld [vmem:[%s3 + $0x330] sm:$0xff]
    %v1277 = vld [vmem:[%s3 + $0x338] sm:$0xff]
    %v1278 = vld [vmem:[%s3 + $0x340] sm:$0xff]
    %v1279 = vld [vmem:[%s3 + $0x348] sm:$0xff]
    %v1280 = vld [vmem:[%s3 + $0x350] sm:$0xff]
    %v1281 = vld [vmem:[%s3 + $0x358] sm:$0xff]
    %v1282 = vld [vmem:[%s3 + $0x360] sm:$0xff]
    %v1283 = vld [vmem:[%s3 + $0x368] sm:$0xff]
    %v1284 = vld [vmem:[%s3 + $0x370] sm:$0xff]
    %v1285 = vld [vmem:[%s3 + $0x378] sm:$0xff]
    %v1286 = vld [vmem:[%s3 + $0x380] sm:$0xff]
    %v1287 = vld [vmem:[%s3 + $0x388] sm:$0xff]
    %v1288 = vld [vmem:[%s3 + $0x390] sm:$0xff]
    %v1289 = vld [vmem:[%s3 + $0x398] sm:$0xff]
    %v1290 = vld [vmem:[%s3 + $0x3a0] sm:$0xff]
    %v1291 = vld [vmem:[%s3 + $0x3a8] sm:$0xff]
    %v1292 = vld [vmem:[%s3 + $0x3b0] sm:$0xff]
    %v1293 = vld [vmem:[%s3 + $0x3b8] sm:$0xff]
    %v1294 = vld [vmem:[%s3 + $0x3c0] sm:$0xff]
    %v1295 = vld [vmem:[%s3 + $0x3c8] sm:$0xff]
    %v1296 = vld [vmem:[%s3 + $0x3d0] sm:$0xff]
    %v1297 = vld [vmem:[%s3 + $0x3d8] sm:$0xff]
    %v1298 = vld [vmem:[%s3 + $0x3e0] sm:$0xff]
    %v1299 = vld [vmem:[%s3 + $0x3e8] sm:$0xff]
    %v1300 = vld [vmem:[%s3 + $0x3f0] sm:$0xff]
    %v1301 = vld [vmem:[%s3 + $0x3f8] sm:$0xff]
    %v1302 = vld [vmem:[%s3 + $0x400] sm:$0xff]
    %v1303 = vld [vmem:[%s3 + $0x408] sm:$0xff]
    %v1304 = vld [vmem:[%s3 + $0x410] sm:$0xff]
    %v1305 = vld [vmem:[%s3 + $0x418] sm:$0xff]
    %v1306 = vld [vmem:[%s3 + $0x420] sm:$0xff]
    %v1307 = vld [vmem:[%s3 + $0x428] sm:$0xff]
    %v1308 = vld [vmem:[%s3 + $0x430] sm:$0xff]
    %v1309 = vld [vmem:[%s3 + $0x438] sm:$0xff]
    %v1310 = vld [vmem:[%s3 + $0x440] sm:$0xff]
    %v1311 = vld [vmem:[%s3 + $0x448] sm:$0xff]
    %v1312 = vld [vmem:[%s3 + $0x450] sm:$0xff]
    %v1313 = vld [vmem:[%s3 + $0x458] sm:$0xff]
    %v1314 = vld [vmem:[%s3 + $0x460] sm:$0xff]
    %v1315 = vld [vmem:[%s3 + $0x468] sm:$0xff]
    %v1316 = vld [vmem:[%s3 + $0x470] sm:$0xff]
    %v1317 = vld [vmem:[%s3 + $0x478] sm:$0xff]
    %v1318 = vld [vmem:[%s3 + $0x480] sm:$0xff]
    %v1319 = vld [vmem:[%s3 + $0x488] sm:$0xff]
    %v1320 = vld [vmem:[%s3 + $0x490] sm:$0xff]
    %v1321 = vld [vmem:[%s3 + $0x498] sm:$0xff]
    %v1322 = vld [vmem:[%s3 + $0x4a0] sm:$0xff]
    %v1323 = vld [vmem:[%s3 + $0x4a8] sm:$0xff]
    %v1324 = vld [vmem:[%s3 + $0x4b0] sm:$0xff]
    %v1325 = vld [vmem:[%s3 + $0x4b8] sm:$0xff]
    %v1326 = vld [vmem:[%s3 + $0x4c0] sm:$0xff]
    %v1327 = vld [vmem:[%s3 + $0x4c8] sm:$0xff]
    %v1328 = vld [vmem:[%s3 + $0x4d0] sm:$0xff]
    %v1329 = vld [vmem:[%s3 + $0x4d8] sm:$0xff]
    %v1330 = vld [vmem:[%s3 + $0x4e0] sm:$0xff]
    %v1331 = vld [vmem:[%s3 + $0x4e8] sm:$0xff]
    %v1332 = vld [vmem:[%s3 + $0x4f0] sm:$0xff]
    %v1333 = vld [vmem:[%s3 + $0x4f8] sm:$0xff]
    %v1334 = vld [vmem:[%s3 + $0x500] sm:$0xff]
    %v1335 = vld [vmem:[%s3 + $0x508] sm:$0xff]
    %v1336 = vld [vmem:[%s3 + $0x510] sm:$0xff]
    %v1337 = vld [vmem:[%s3 + $0x518] sm:$0xff]
    %v1338 = vld [vmem:[%s3 + $0x520] sm:$0xff]
    %v1339 = vld [vmem:[%s3 + $0x528] sm:$0xff]
    %v1340 = vld [vmem:[%s3 + $0x530] sm:$0xff]
    %v1341 = vld [vmem:[%s3 + $0x538] sm:$0xff]
    %v1342 = vld [vmem:[%s3 + $0x540] sm:$0xff]
    %v1343 = vld [vmem:[%s3 + $0x548] sm:$0xff]
    %v1344 = vld [vmem:[%s3 + $0x550] sm:$0xff]
    %v1345 = vld [vmem:[%s3 + $0x558] sm:$0xff]
    %v1346 = vld [vmem:[%s3 + $0x560] sm:$0xff]
    %v1347 = vld [vmem:[%s3 + $0x568] sm:$0xff]
    %v1348 = vld [vmem:[%s3 + $0x570] sm:$0xff]
    %v1349 = vld [vmem:[%s3 + $0x578] sm:$0xff]
    %v1350 = vld [vmem:[%s3 + $0x580] sm:$0xff]
    %v1351 = vld [vmem:[%s3 + $0x588] sm:$0xff]
    %v1352 = vld [vmem:[%s3 + $0x590] sm:$0xff]
    %v1353 = vld [vmem:[%s3 + $0x598] sm:$0xff]
    %v1354 = vld [vmem:[%s3 + $0x5a0] sm:$0xff]
    %v1355 = vld [vmem:[%s3 + $0x5a8] sm:$0xff]
    %v1356 = vld [vmem:[%s3 + $0x5b0] sm:$0xff]
    %v1357 = vld [vmem:[%s3 + $0x5b8] sm:$0xff]
    %v1358 = vld [vmem:[%s3 + $0x5c0] sm:$0xff]
    %v1359 = vld [vmem:[%s3 + $0x5c8] sm:$0xff]
    %v1360 = vld [vmem:[%s3 + $0x5d0] sm:$0xff]
    %v1361 = vld [vmem:[%s3 + $0x5d8] sm:$0xff]
    %v1362 = vld [vmem:[%s3 + $0x5e0] sm:$0xff]
    %v1363 = vld [vmem:[%s3 + $0x5e8] sm:$0xff]
    %v1364 = vld [vmem:[%s3 + $0x5f0] sm:$0xff]
    %v1365 = vld [vmem:[%s3 + $0x5f8] sm:$0xff]
    %v1366 = vld [vmem:[%s4] sm:$0xf]
    %v1368 = vperm.slane %v1366, 0
    %v1369 = vperm.slane %v1366, 1
    %v1370 = vperm.slane %v1366, 2
    %v1371 = vperm.slane %v1366, 3
    %v1568 = vunpack.c.l.b16 %v1174
    %v1569 = vunpack.c.h.b16 %v1174
    %v1570 = vunpack.c.l.b16 %v1175
    %v1571 = vunpack.c.h.b16 %v1175
    %v1572 = vunpack.c.l.b16 %v1176
    %v1573 = vunpack.c.h.b16 %v1176
    %v1574 = vunpack.c.l.b16 %v1177
    %v1575 = vunpack.c.h.b16 %v1177
    %v1576 = vunpack.c.l.b16 %v1178
    %v1577 = vunpack.c.h.b16 %v1178
    %v1578 = vunpack.c.l.b16 %v1179
    %v1579 = vunpack.c.h.b16 %v1179
    %v1580 = vunpack.c.l.b16 %v1180
    %v1581 = vunpack.c.h.b16 %v1180
    %v1582 = vunpack.c.l.b16 %v1181
    %v1583 = vunpack.c.h.b16 %v1181
    %v1584 = vunpack.c.l.b16 %v1182
    %v1585 = vunpack.c.h.b16 %v1182
    %v1586 = vunpack.c.l.b16 %v1183
    %v1587 = vunpack.c.h.b16 %v1183
    %v1588 = vunpack.c.l.b16 %v1184
    %v1589 = vunpack.c.h.b16 %v1184
    %v1590 = vunpack.c.l.b16 %v1185
    %v1591 = vunpack.c.h.b16 %v1185
    %v1592 = vunpack.c.l.b16 %v1186
    %v1593 = vunpack.c.h.b16 %v1186
    %v1594 = vunpack.c.l.b16 %v1187
    %v1595 = vunpack.c.h.b16 %v1187
    %v1596 = vunpack.c.l.b16 %v1188
    %v1597 = vunpack.c.h.b16 %v1188
    %v1598 = vunpack.c.l.b16 %v1189
    %v1599 = vunpack.c.h.b16 %v1189
    %v1600 = vunpack.c.l.b16 %v1190
    %v1601 = vunpack.c.h.b16 %v1190
    %v1602 = vunpack.c.l.b16 %v1191
    %v1603 = vunpack.c.h.b16 %v1191
    %v1604 = vunpack.c.l.b16 %v1192
    %v1605 = vunpack.c.h.b16 %v1192
    %v1606 = vunpack.c.l.b16 %v1193
    %v1607 = vunpack.c.h.b16 %v1193
    %v1608 = vunpack.c.l.b16 %v1194
    %v1609 = vunpack.c.h.b16 %v1194
    %v1610 = vunpack.c.l.b16 %v1195
    %v1611 = vunpack.c.h.b16 %v1195
    %v1612 = vunpack.c.l.b16 %v1196
    %v1613 = vunpack.c.h.b16 %v1196
    %v1614 = vunpack.c.l.b16 %v1197
    %v1615 = vunpack.c.h.b16 %v1197
    %v1616 = vunpack.c.l.b16 %v1198
    %v1617 = vunpack.c.h.b16 %v1198
    %v1618 = vunpack.c.l.b16 %v1199
    %v1619 = vunpack.c.h.b16 %v1199
    %v1620 = vunpack.c.l.b16 %v1200
    %v1621 = vunpack.c.h.b16 %v1200
    %v1622 = vunpack.c.l.b16 %v1201
    %v1623 = vunpack.c.h.b16 %v1201
    %v1624 = vunpack.c.l.b16 %v1202
    %v1625 = vunpack.c.h.b16 %v1202
    %v1626 = vunpack.c.l.b16 %v1203
    %v1627 = vunpack.c.h.b16 %v1203
    %v1628 = vunpack.c.l.b16 %v1204
    %v1629 = vunpack.c.h.b16 %v1204
    %v1630 = vunpack.c.l.b16 %v1205
    %v1631 = vunpack.c.h.b16 %v1205
    %v1632 = vunpack.c.l.b16 %v1206
    %v1633 = vunpack.c.h.b16 %v1206
    %v1634 = vunpack.c.l.b16 %v1207
    %v1635 = vunpack.c.h.b16 %v1207
    %v1636 = vunpack.c.l.b16 %v1208
    %v1637 = vunpack.c.h.b16 %v1208
    %v1638 = vunpack.c.l.b16 %v1209
    %v1639 = vunpack.c.h.b16 %v1209
    %v1640 = vunpack.c.l.b16 %v1210
    %v1641 = vunpack.c.h.b16 %v1210
    %v1642 = vunpack.c.l.b16 %v1211
    %v1643 = vunpack.c.h.b16 %v1211
    %v1644 = vunpack.c.l.b16 %v1212
    %v1645 = vunpack.c.h.b16 %v1212
    %v1646 = vunpack.c.l.b16 %v1213
    %v1647 = vunpack.c.h.b16 %v1213
    %v1648 = vunpack.c.l.b16 %v1214
    %v1649 = vunpack.c.h.b16 %v1214
    %v1650 = vunpack.c.l.b16 %v1215
    %v1651 = vunpack.c.h.b16 %v1215
    %v1652 = vunpack.c.l.b16 %v1216
    %v1653 = vunpack.c.h.b16 %v1216
    %v1654 = vunpack.c.l.b16 %v1217
    %v1655 = vunpack.c.h.b16 %v1217
    %v1656 = vunpack.c.l.b16 %v1218
    %v1657 = vunpack.c.h.b16 %v1218
    %v1658 = vunpack.c.l.b16 %v1219
    %v1659 = vunpack.c.h.b16 %v1219
    %v1660 = vunpack.c.l.b16 %v1220
    %v1661 = vunpack.c.h.b16 %v1220
    %v1662 = vunpack.c.l.b16 %v1221
    %v1663 = vunpack.c.h.b16 %v1221
    %v1664 = vunpack.c.l.b16 %v1222
    %v1665 = vunpack.c.h.b16 %v1222
    %v1666 = vunpack.c.l.b16 %v1223
    %v1667 = vunpack.c.h.b16 %v1223
    %v1668 = vunpack.c.l.b16 %v1224
    %v1669 = vunpack.c.h.b16 %v1224
    %v1670 = vunpack.c.l.b16 %v1225
    %v1671 = vunpack.c.h.b16 %v1225
    %v1672 = vunpack.c.l.b16 %v1226
    %v1673 = vunpack.c.h.b16 %v1226
    %v1674 = vunpack.c.l.b16 %v1227
    %v1675 = vunpack.c.h.b16 %v1227
    %v1676 = vunpack.c.l.b16 %v1228
    %v1677 = vunpack.c.h.b16 %v1228
    %v1678 = vunpack.c.l.b16 %v1229
    %v1679 = vunpack.c.h.b16 %v1229
    %v1680 = vunpack.c.l.b16 %v1230
    %v1681 = vunpack.c.h.b16 %v1230
    %v1682 = vunpack.c.l.b16 %v1231
    %v1683 = vunpack.c.h.b16 %v1231
    %v1684 = vunpack.c.l.b16 %v1232
    %v1685 = vunpack.c.h.b16 %v1232
    %v1686 = vunpack.c.l.b16 %v1233
    %v1687 = vunpack.c.h.b16 %v1233
    %v1688 = vunpack.c.l.b16 %v1234
    %v1689 = vunpack.c.h.b16 %v1234
    %v1690 = vunpack.c.l.b16 %v1235
    %v1691 = vunpack.c.h.b16 %v1235
    %v1692 = vunpack.c.l.b16 %v1236
    %v1693 = vunpack.c.h.b16 %v1236
    %v1694 = vunpack.c.l.b16 %v1237
    %v1695 = vunpack.c.h.b16 %v1237
    %v1696 = vunpack.c.l.b16 %v1238
    %v1697 = vunpack.c.h.b16 %v1238
    %v1698 = vunpack.c.l.b16 %v1239
    %v1699 = vunpack.c.h.b16 %v1239
    %v1700 = vunpack.c.l.b16 %v1240
    %v1701 = vunpack.c.h.b16 %v1240
    %v1702 = vunpack.c.l.b16 %v1241
    %v1703 = vunpack.c.h.b16 %v1241
    %v1704 = vunpack.c.l.b16 %v1242
    %v1705 = vunpack.c.h.b16 %v1242
    %v1706 = vunpack.c.l.b16 %v1243
    %v1707 = vunpack.c.h.b16 %v1243
    %v1708 = vunpack.c.l.b16 %v1244
    %v1709 = vunpack.c.h.b16 %v1244
    %v1710 = vunpack.c.l.b16 %v1245
    %v1711 = vunpack.c.h.b16 %v1245
    %v1712 = vunpack.c.l.b16 %v1246
    %v1713 = vunpack.c.h.b16 %v1246
    %v1714 = vunpack.c.l.b16 %v1247
    %v1715 = vunpack.c.h.b16 %v1247
    %v1716 = vunpack.c.l.b16 %v1248
    %v1717 = vunpack.c.h.b16 %v1248
    %v1718 = vunpack.c.l.b16 %v1249
    %v1719 = vunpack.c.h.b16 %v1249
    %v1720 = vunpack.c.l.b16 %v1250
    %v1721 = vunpack.c.h.b16 %v1250
    %v1722 = vunpack.c.l.b16 %v1251
    %v1723 = vunpack.c.h.b16 %v1251
    %v1724 = vunpack.c.l.b16 %v1252
    %v1725 = vunpack.c.h.b16 %v1252
    %v1726 = vunpack.c.l.b16 %v1253
    %v1727 = vunpack.c.h.b16 %v1253
    %v1728 = vunpack.c.l.b16 %v1254
    %v1729 = vunpack.c.h.b16 %v1254
    %v1730 = vunpack.c.l.b16 %v1255
    %v1731 = vunpack.c.h.b16 %v1255
    %v1732 = vunpack.c.l.b16 %v1256
    %v1733 = vunpack.c.h.b16 %v1256
    %v1734 = vunpack.c.l.b16 %v1257
    %v1735 = vunpack.c.h.b16 %v1257
    %v1736 = vunpack.c.l.b16 %v1258
    %v1737 = vunpack.c.h.b16 %v1258
    %v1738 = vunpack.c.l.b16 %v1259
    %v1739 = vunpack.c.h.b16 %v1259
    %v1740 = vunpack.c.l.b16 %v1260
    %v1741 = vunpack.c.h.b16 %v1260
    %v1742 = vunpack.c.l.b16 %v1261
    %v1743 = vunpack.c.h.b16 %v1261
    %v1744 = vunpack.c.l.b16 %v1262
    %v1745 = vunpack.c.h.b16 %v1262
    %v1746 = vunpack.c.l.b16 %v1263
    %v1747 = vunpack.c.h.b16 %v1263
    %v1748 = vunpack.c.l.b16 %v1264
    %v1749 = vunpack.c.h.b16 %v1264
    %v1750 = vunpack.c.l.b16 %v1265
    %v1751 = vunpack.c.h.b16 %v1265
    %v1752 = vunpack.c.l.b16 %v1266
    %v1753 = vunpack.c.h.b16 %v1266
    %v1754 = vunpack.c.l.b16 %v1267
    %v1755 = vunpack.c.h.b16 %v1267
    %v1756 = vunpack.c.l.b16 %v1268
    %v1757 = vunpack.c.h.b16 %v1268
    %v1758 = vunpack.c.l.b16 %v1269
    %v1759 = vunpack.c.h.b16 %v1269
    %v1760 = vunpack.c.l.b16 %v1270
    %v1761 = vunpack.c.h.b16 %v1270
    %v1762 = vunpack.c.l.b16 %v1271
    %v1763 = vunpack.c.h.b16 %v1271
    %v1764 = vunpack.c.l.b16 %v1272
    %v1765 = vunpack.c.h.b16 %v1272
    %v1766 = vunpack.c.l.b16 %v1273
    %v1767 = vunpack.c.h.b16 %v1273
    %v1768 = vunpack.c.l.b16 %v1274
    %v1769 = vunpack.c.h.b16 %v1274
    %v1770 = vunpack.c.l.b16 %v1275
    %v1771 = vunpack.c.h.b16 %v1275
    %v1772 = vunpack.c.l.b16 %v1276
    %v1773 = vunpack.c.h.b16 %v1276
    %v1774 = vunpack.c.l.b16 %v1277
    %v1775 = vunpack.c.h.b16 %v1277
    %v1776 = vunpack.c.l.b16 %v1278
    %v1777 = vunpack.c.h.b16 %v1278
    %v1778 = vunpack.c.l.b16 %v1279
    %v1779 = vunpack.c.h.b16 %v1279
    %v1780 = vunpack.c.l.b16 %v1280
    %v1781 = vunpack.c.h.b16 %v1280
    %v1782 = vunpack.c.l.b16 %v1281
    %v1783 = vunpack.c.h.b16 %v1281
    %v1784 = vunpack.c.l.b16 %v1282
    %v1785 = vunpack.c.h.b16 %v1282
    %v1786 = vunpack.c.l.b16 %v1283
    %v1787 = vunpack.c.h.b16 %v1283
    %v1788 = vunpack.c.l.b16 %v1284
    %v1789 = vunpack.c.h.b16 %v1284
    %v1790 = vunpack.c.l.b16 %v1285
    %v1791 = vunpack.c.h.b16 %v1285
    %v1792 = vunpack.c.l.b16 %v1286
    %v1793 = vunpack.c.h.b16 %v1286
    %v1794 = vunpack.c.l.b16 %v1287
    %v1795 = vunpack.c.h.b16 %v1287
    %v1796 = vunpack.c.l.b16 %v1288
    %v1797 = vunpack.c.h.b16 %v1288
    %v1798 = vunpack.c.l.b16 %v1289
    %v1799 = vunpack.c.h.b16 %v1289
    %v1800 = vunpack.c.l.b16 %v1290
    %v1801 = vunpack.c.h.b16 %v1290
    %v1802 = vunpack.c.l.b16 %v1291
    %v1803 = vunpack.c.h.b16 %v1291
    %v1804 = vunpack.c.l.b16 %v1292
    %v1805 = vunpack.c.h.b16 %v1292
    %v1806 = vunpack.c.l.b16 %v1293
    %v1807 = vunpack.c.h.b16 %v1293
    %v1808 = vunpack.c.l.b16 %v1294
    %v1809 = vunpack.c.h.b16 %v1294
    %v1810 = vunpack.c.l.b16 %v1295
    %v1811 = vunpack.c.h.b16 %v1295
    %v1812 = vunpack.c.l.b16 %v1296
    %v1813 = vunpack.c.h.b16 %v1296
    %v1814 = vunpack.c.l.b16 %v1297
    %v1815 = vunpack.c.h.b16 %v1297
    %v1816 = vunpack.c.l.b16 %v1298
    %v1817 = vunpack.c.h.b16 %v1298
    %v1818 = vunpack.c.l.b16 %v1299
    %v1819 = vunpack.c.h.b16 %v1299
    %v1820 = vunpack.c.l.b16 %v1300
    %v1821 = vunpack.c.h.b16 %v1300
    %v1822 = vunpack.c.l.b16 %v1301
    %v1823 = vunpack.c.h.b16 %v1301
    %v1824 = vunpack.c.l.b16 %v1302
    %v1825 = vunpack.c.h.b16 %v1302
    %v1826 = vunpack.c.l.b16 %v1303
    %v1827 = vunpack.c.h.b16 %v1303
    %v1828 = vunpack.c.l.b16 %v1304
    %v1829 = vunpack.c.h.b16 %v1304
    %v1830 = vunpack.c.l.b16 %v1305
    %v1831 = vunpack.c.h.b16 %v1305
    %v1832 = vunpack.c.l.b16 %v1306
    %v1833 = vunpack.c.h.b16 %v1306
    %v1834 = vunpack.c.l.b16 %v1307
    %v1835 = vunpack.c.h.b16 %v1307
    %v1836 = vunpack.c.l.b16 %v1308
    %v1837 = vunpack.c.h.b16 %v1308
    %v1838 = vunpack.c.l.b16 %v1309
    %v1839 = vunpack.c.h.b16 %v1309
    %v1840 = vunpack.c.l.b16 %v1310
    %v1841 = vunpack.c.h.b16 %v1310
    %v1842 = vunpack.c.l.b16 %v1311
    %v1843 = vunpack.c.h.b16 %v1311
    %v1844 = vunpack.c.l.b16 %v1312
    %v1845 = vunpack.c.h.b16 %v1312
    %v1846 = vunpack.c.l.b16 %v1313
    %v1847 = vunpack.c.h.b16 %v1313
    %v1848 = vunpack.c.l.b16 %v1314
    %v1849 = vunpack.c.h.b16 %v1314
    %v1850 = vunpack.c.l.b16 %v1315
    %v1851 = vunpack.c.h.b16 %v1315
    %v1852 = vunpack.c.l.b16 %v1316
    %v1853 = vunpack.c.h.b16 %v1316
    %v1854 = vunpack.c.l.b16 %v1317
    %v1855 = vunpack.c.h.b16 %v1317
    %v1856 = vunpack.c.l.b16 %v1318
    %v1857 = vunpack.c.h.b16 %v1318
    %v1858 = vunpack.c.l.b16 %v1319
    %v1859 = vunpack.c.h.b16 %v1319
    %v1860 = vunpack.c.l.b16 %v1320
    %v1861 = vunpack.c.h.b16 %v1320
    %v1862 = vunpack.c.l.b16 %v1321
    %v1863 = vunpack.c.h.b16 %v1321
    %v1864 = vunpack.c.l.b16 %v1322
    %v1865 = vunpack.c.h.b16 %v1322
    %v1866 = vunpack.c.l.b16 %v1323
    %v1867 = vunpack.c.h.b16 %v1323
    %v1868 = vunpack.c.l.b16 %v1324
    %v1869 = vunpack.c.h.b16 %v1324
    %v1870 = vunpack.c.l.b16 %v1325
    %v1871 = vunpack.c.h.b16 %v1325
    %v1872 = vunpack.c.l.b16 %v1326
    %v1873 = vunpack.c.h.b16 %v1326
    %v1874 = vunpack.c.l.b16 %v1327
    %v1875 = vunpack.c.h.b16 %v1327
    %v1876 = vunpack.c.l.b16 %v1328
    %v1877 = vunpack.c.h.b16 %v1328
    %v1878 = vunpack.c.l.b16 %v1329
    %v1879 = vunpack.c.h.b16 %v1329
    %v1880 = vunpack.c.l.b16 %v1330
    %v1881 = vunpack.c.h.b16 %v1330
    %v1882 = vunpack.c.l.b16 %v1331
    %v1883 = vunpack.c.h.b16 %v1331
    %v1884 = vunpack.c.l.b16 %v1332
    %v1885 = vunpack.c.h.b16 %v1332
    %v1886 = vunpack.c.l.b16 %v1333
    %v1887 = vunpack.c.h.b16 %v1333
    %v1888 = vunpack.c.l.b16 %v1334
    %v1889 = vunpack.c.h.b16 %v1334
    %v1890 = vunpack.c.l.b16 %v1335
    %v1891 = vunpack.c.h.b16 %v1335
    %v1892 = vunpack.c.l.b16 %v1336
    %v1893 = vunpack.c.h.b16 %v1336
    %v1894 = vunpack.c.l.b16 %v1337
    %v1895 = vunpack.c.h.b16 %v1337
    %v1896 = vunpack.c.l.b16 %v1338
    %v1897 = vunpack.c.h.b16 %v1338
    %v1898 = vunpack.c.l.b16 %v1339
    %v1899 = vunpack.c.h.b16 %v1339
    %v1900 = vunpack.c.l.b16 %v1340
    %v1901 = vunpack.c.h.b16 %v1340
    %v1902 = vunpack.c.l.b16 %v1341
    %v1903 = vunpack.c.h.b16 %v1341
    %v1904 = vunpack.c.l.b16 %v1342
    %v1905 = vunpack.c.h.b16 %v1342
    %v1906 = vunpack.c.l.b16 %v1343
    %v1907 = vunpack.c.h.b16 %v1343
    %v1908 = vunpack.c.l.b16 %v1344
    %v1909 = vunpack.c.h.b16 %v1344
    %v1910 = vunpack.c.l.b16 %v1345
    %v1911 = vunpack.c.h.b16 %v1345
    %v1912 = vunpack.c.l.b16 %v1346
    %v1913 = vunpack.c.h.b16 %v1346
    %v1914 = vunpack.c.l.b16 %v1347
    %v1915 = vunpack.c.h.b16 %v1347
    %v1916 = vunpack.c.l.b16 %v1348
    %v1917 = vunpack.c.h.b16 %v1348
    %v1918 = vunpack.c.l.b16 %v1349
    %v1919 = vunpack.c.h.b16 %v1349
    %v1920 = vunpack.c.l.b16 %v1350
    %v1921 = vunpack.c.h.b16 %v1350
    %v1922 = vunpack.c.l.b16 %v1351
    %v1923 = vunpack.c.h.b16 %v1351
    %v1924 = vunpack.c.l.b16 %v1352
    %v1925 = vunpack.c.h.b16 %v1352
    %v1926 = vunpack.c.l.b16 %v1353
    %v1927 = vunpack.c.h.b16 %v1353
    %v1928 = vunpack.c.l.b16 %v1354
    %v1929 = vunpack.c.h.b16 %v1354
    %v1930 = vunpack.c.l.b16 %v1355
    %v1931 = vunpack.c.h.b16 %v1355
    %v1932 = vunpack.c.l.b16 %v1356
    %v1933 = vunpack.c.h.b16 %v1356
    %v1934 = vunpack.c.l.b16 %v1357
    %v1935 = vunpack.c.h.b16 %v1357
    %v1936 = vunpack.c.l.b16 %v1358
    %v1937 = vunpack.c.h.b16 %v1358
    %v1938 = vunpack.c.l.b16 %v1359
    %v1939 = vunpack.c.h.b16 %v1359
    %v1940 = vunpack.c.l.b16 %v1360
    %v1941 = vunpack.c.h.b16 %v1360
    %v1942 = vunpack.c.l.b16 %v1361
    %v1943 = vunpack.c.h.b16 %v1361
    %v1944 = vunpack.c.l.b16 %v1362
    %v1945 = vunpack.c.h.b16 %v1362
    %v1946 = vunpack.c.l.b16 %v1363
    %v1947 = vunpack.c.h.b16 %v1363
    %v1948 = vunpack.c.l.b16 %v1364
    %v1949 = vunpack.c.h.b16 %v1364
    %v1950 = vunpack.c.l.b16 %v1365
    %v1951 = vunpack.c.h.b16 %v1365
    %v1952 = vpack.c.b16 %v1572, %v1568
    %v1953 = vpack.c.b16 %v1573, %v1569
    %v1954 = vpack.c.b16 %v1574, %v1570
    %v1955 = vpack.c.b16 %v1575, %v1571
    %v1956 = vpack.c.b16 %v1580, %v1576
    %v1957 = vpack.c.b16 %v1581, %v1577
    %v1958 = vpack.c.b16 %v1582, %v1578
    %v1959 = vpack.c.b16 %v1583, %v1579
    %v1960 = vpack.c.b16 %v1588, %v1584
    %v1961 = vpack.c.b16 %v1589, %v1585
    %v1962 = vpack.c.b16 %v1590, %v1586
    %v1963 = vpack.c.b16 %v1591, %v1587
    %v1964 = vpack.c.b16 %v1596, %v1592
    %v1965 = vpack.c.b16 %v1597, %v1593
    %v1966 = vpack.c.b16 %v1598, %v1594
    %v1967 = vpack.c.b16 %v1599, %v1595
    %v1968 = vpack.c.b16 %v1604, %v1600
    %v1969 = vpack.c.b16 %v1605, %v1601
    %v1970 = vpack.c.b16 %v1606, %v1602
    %v1971 = vpack.c.b16 %v1607, %v1603
    %v1972 = vpack.c.b16 %v1612, %v1608
    %v1973 = vpack.c.b16 %v1613, %v1609
    %v1974 = vpack.c.b16 %v1614, %v1610
    %v1975 = vpack.c.b16 %v1615, %v1611
    %v1976 = vpack.c.b16 %v1620, %v1616
    %v1977 = vpack.c.b16 %v1621, %v1617
    %v1978 = vpack.c.b16 %v1622, %v1618
    %v1979 = vpack.c.b16 %v1623, %v1619
    %v1980 = vpack.c.b16 %v1628, %v1624
    %v1981 = vpack.c.b16 %v1629, %v1625
    %v1982 = vpack.c.b16 %v1630, %v1626
    %v1983 = vpack.c.b16 %v1631, %v1627
    %v1984 = vpack.c.b16 %v1636, %v1632
    %v1985 = vpack.c.b16 %v1637, %v1633
    %v1986 = vpack.c.b16 %v1638, %v1634
    %v1987 = vpack.c.b16 %v1639, %v1635
    %v1988 = vpack.c.b16 %v1644, %v1640
    %v1989 = vpack.c.b16 %v1645, %v1641
    %v1990 = vpack.c.b16 %v1646, %v1642
    %v1991 = vpack.c.b16 %v1647, %v1643
    %v1992 = vpack.c.b16 %v1652, %v1648
    %v1993 = vpack.c.b16 %v1653, %v1649
    %v1994 = vpack.c.b16 %v1654, %v1650
    %v1995 = vpack.c.b16 %v1655, %v1651
    %v1996 = vpack.c.b16 %v1660, %v1656
    %v1997 = vpack.c.b16 %v1661, %v1657
    %v1998 = vpack.c.b16 %v1662, %v1658
    %v1999 = vpack.c.b16 %v1663, %v1659
    %v2000 = vpack.c.b16 %v1668, %v1664
    %v2001 = vpack.c.b16 %v1669, %v1665
    %v2002 = vpack.c.b16 %v1670, %v1666
    %v2003 = vpack.c.b16 %v1671, %v1667
    %v2004 = vpack.c.b16 %v1676, %v1672
    %v2005 = vpack.c.b16 %v1677, %v1673
    %v2006 = vpack.c.b16 %v1678, %v1674
    %v2007 = vpack.c.b16 %v1679, %v1675
    %v2008 = vpack.c.b16 %v1684, %v1680
    %v2009 = vpack.c.b16 %v1685, %v1681
    %v2010 = vpack.c.b16 %v1686, %v1682
    %v2011 = vpack.c.b16 %v1687, %v1683
    %v2012 = vpack.c.b16 %v1692, %v1688
    %v2013 = vpack.c.b16 %v1693, %v1689
    %v2014 = vpack.c.b16 %v1694, %v1690
    %v2015 = vpack.c.b16 %v1695, %v1691
    %v2016 = vpack.c.b16 %v1700, %v1696
    %v2017 = vpack.c.b16 %v1701, %v1697
    %v2018 = vpack.c.b16 %v1702, %v1698
    %v2019 = vpack.c.b16 %v1703, %v1699
    %v2020 = vpack.c.b16 %v1708, %v1704
    %v2021 = vpack.c.b16 %v1709, %v1705
    %v2022 = vpack.c.b16 %v1710, %v1706
    %v2023 = vpack.c.b16 %v1711, %v1707
    %v2024 = vpack.c.b16 %v1716, %v1712
    %v2025 = vpack.c.b16 %v1717, %v1713
    %v2026 = vpack.c.b16 %v1718, %v1714
    %v2027 = vpack.c.b16 %v1719, %v1715
    %v2028 = vpack.c.b16 %v1724, %v1720
    %v2029 = vpack.c.b16 %v1725, %v1721
    %v2030 = vpack.c.b16 %v1726, %v1722
    %v2031 = vpack.c.b16 %v1727, %v1723
    %v2032 = vpack.c.b16 %v1732, %v1728
    %v2033 = vpack.c.b16 %v1733, %v1729
    %v2034 = vpack.c.b16 %v1734, %v1730
    %v2035 = vpack.c.b16 %v1735, %v1731
    %v2036 = vpack.c.b16 %v1740, %v1736
    %v2037 = vpack.c.b16 %v1741, %v1737
    %v2038 = vpack.c.b16 %v1742, %v1738
    %v2039 = vpack.c.b16 %v1743, %v1739
    %v2040 = vpack.c.b16 %v1748, %v1744
    %v2041 = vpack.c.b16 %v1749, %v1745
    %v2042 = vpack.c.b16 %v1750, %v1746
    %v2043 = vpack.c.b16 %v1751, %v1747
    %v2044 = vpack.c.b16 %v1756, %v1752
    %v2045 = vpack.c.b16 %v1757, %v1753
    %v2046 = vpack.c.b16 %v1758, %v1754
    %v2047 = vpack.c.b16 %v1759, %v1755
    %v2048 = vpack.c.b16 %v1764, %v1760
    %v2049 = vpack.c.b16 %v1765, %v1761
    %v2050 = vpack.c.b16 %v1766, %v1762
    %v2051 = vpack.c.b16 %v1767, %v1763
    %v2052 = vpack.c.b16 %v1772, %v1768
    %v2053 = vpack.c.b16 %v1773, %v1769
    %v2054 = vpack.c.b16 %v1774, %v1770
    %v2055 = vpack.c.b16 %v1775, %v1771
    %v2056 = vpack.c.b16 %v1780, %v1776
    %v2057 = vpack.c.b16 %v1781, %v1777
    %v2058 = vpack.c.b16 %v1782, %v1778
    %v2059 = vpack.c.b16 %v1783, %v1779
    %v2060 = vpack.c.b16 %v1788, %v1784
    %v2061 = vpack.c.b16 %v1789, %v1785
    %v2062 = vpack.c.b16 %v1790, %v1786
    %v2063 = vpack.c.b16 %v1791, %v1787
    %v2064 = vpack.c.b16 %v1796, %v1792
    %v2065 = vpack.c.b16 %v1797, %v1793
    %v2066 = vpack.c.b16 %v1798, %v1794
    %v2067 = vpack.c.b16 %v1799, %v1795
    %v2068 = vpack.c.b16 %v1804, %v1800
    %v2069 = vpack.c.b16 %v1805, %v1801
    %v2070 = vpack.c.b16 %v1806, %v1802
    %v2071 = vpack.c.b16 %v1807, %v1803
    %v2072 = vpack.c.b16 %v1812, %v1808
    %v2073 = vpack.c.b16 %v1813, %v1809
    %v2074 = vpack.c.b16 %v1814, %v1810
    %v2075 = vpack.c.b16 %v1815, %v1811
    %v2076 = vpack.c.b16 %v1820, %v1816
    %v2077 = vpack.c.b16 %v1821, %v1817
    %v2078 = vpack.c.b16 %v1822, %v1818
    %v2079 = vpack.c.b16 %v1823, %v1819
    %v2080 = vpack.c.b16 %v1828, %v1824
    %v2081 = vpack.c.b16 %v1829, %v1825
    %v2082 = vpack.c.b16 %v1830, %v1826
    %v2083 = vpack.c.b16 %v1831, %v1827
    %v2084 = vpack.c.b16 %v1836, %v1832
    %v2085 = vpack.c.b16 %v1837, %v1833
    %v2086 = vpack.c.b16 %v1838, %v1834
    %v2087 = vpack.c.b16 %v1839, %v1835
    %v2088 = vpack.c.b16 %v1844, %v1840
    %v2089 = vpack.c.b16 %v1845, %v1841
    %v2090 = vpack.c.b16 %v1846, %v1842
    %v2091 = vpack.c.b16 %v1847, %v1843
    %v2092 = vpack.c.b16 %v1852, %v1848
    %v2093 = vpack.c.b16 %v1853, %v1849
    %v2094 = vpack.c.b16 %v1854, %v1850
    %v2095 = vpack.c.b16 %v1855, %v1851
    %v2096 = vpack.c.b16 %v1860, %v1856
    %v2097 = vpack.c.b16 %v1861, %v1857
    %v2098 = vpack.c.b16 %v1862, %v1858
    %v2099 = vpack.c.b16 %v1863, %v1859
    %v2100 = vpack.c.b16 %v1868, %v1864
    %v2101 = vpack.c.b16 %v1869, %v1865
    %v2102 = vpack.c.b16 %v1870, %v1866
    %v2103 = vpack.c.b16 %v1871, %v1867
    %v2104 = vpack.c.b16 %v1876, %v1872
    %v2105 = vpack.c.b16 %v1877, %v1873
    %v2106 = vpack.c.b16 %v1878, %v1874
    %v2107 = vpack.c.b16 %v1879, %v1875
    %v2108 = vpack.c.b16 %v1884, %v1880
    %v2109 = vpack.c.b16 %v1885, %v1881
    %v2110 = vpack.c.b16 %v1886, %v1882
    %v2111 = vpack.c.b16 %v1887, %v1883
    %v2112 = vpack.c.b16 %v1892, %v1888
    %v2113 = vpack.c.b16 %v1893, %v1889
    %v2114 = vpack.c.b16 %v1894, %v1890
    %v2115 = vpack.c.b16 %v1895, %v1891
    %v2116 = vpack.c.b16 %v1900, %v1896
    %v2117 = vpack.c.b16 %v1901, %v1897
    %v2118 = vpack.c.b16 %v1902, %v1898
    %v2119 = vpack.c.b16 %v1903, %v1899
    %v2120 = vpack.c.b16 %v1908, %v1904
    %v2121 = vpack.c.b16 %v1909, %v1905
    %v2122 = vpack.c.b16 %v1910, %v1906
    %v2123 = vpack.c.b16 %v1911, %v1907
    %v2124 = vpack.c.b16 %v1916, %v1912
    %v2125 = vpack.c.b16 %v1917, %v1913
    %v2126 = vpack.c.b16 %v1918, %v1914
    %v2127 = vpack.c.b16 %v1919, %v1915
    %v2128 = vpack.c.b16 %v1924, %v1920
    %v2129 = vpack.c.b16 %v1925, %v1921
    %v2130 = vpack.c.b16 %v1926, %v1922
    %v2131 = vpack.c.b16 %v1927, %v1923
    %v2132 = vpack.c.b16 %v1932, %v1928
    %v2133 = vpack.c.b16 %v1933, %v1929
    %v2134 = vpack.c.b16 %v1934, %v1930
    %v2135 = vpack.c.b16 %v1935, %v1931
    %v2136 = vpack.c.b16 %v1940, %v1936
    %v2137 = vpack.c.b16 %v1941, %v1937
    %v2138 = vpack.c.b16 %v1942, %v1938
    %v2139 = vpack.c.b16 %v1943, %v1939
    %v2140 = vpack.c.b16 %v1948, %v1944
    %v2141 = vpack.c.b16 %v1949, %v1945
    %v2142 = vpack.c.b16 %v1950, %v1946
    %v2143 = vpack.c.b16 %v1951, %v1947
    %2336 = vmatpush.bf16.msra.mxu0 %v1980
    %2337 = vmatpush.bf16.msra.mxu0 %v1976
    %2338 = vmatpush.bf16.msra.mxu0 %v1972
    %2339 = vmatpush.bf16.msra.mxu0 %v1968
    %2340 = vmatpush.bf16.msra.mxu0 %v1964
    %2341 = vmatpush.bf16.msra.mxu0 %v1960
    %2342 = vmatpush.bf16.msra.mxu0 %v1956
    %2343 = vmatpush.bf16.msra.mxu0 %v1952
    %2344 = vmatmul.bf16.gmra.mxu0 %v1168
    %v2345 = vpop.f32.mrf.mxu0
    %v2346 = vadd.f32 %v1368, %v2345
    %v2347 = vpop.f32.mrf.mxu0
    %2348 = vdwg.mxu0
    %2349 = vmatpush.bf16.msra.mxu0 %v2012
    %2350 = vmatpush.bf16.msra.mxu0 %v2008
    %2351 = vmatpush.bf16.msra.mxu0 %v2004
    %2352 = vmatpush.bf16.msra.mxu0 %v2000
    %2353 = vmatpush.bf16.msra.mxu0 %v1996
    %2354 = vmatpush.bf16.msra.mxu0 %v1992
    %2355 = vmatpush.bf16.msra.mxu0 %v1988
    %2356 = vmatpush.bf16.msra.mxu0 %v1984
    %2357 = vmatmul.bf16.gmra.mxu0 %v1169
    %v2358 = vpop.f32.mrf.mxu0
    %v2359 = vadd.f32 %v2346, %v2358
    %v2360 = vpop.f32.mrf.mxu0
    %2361 = vdwg.mxu0
    %2362 = vmatpush.bf16.msra.mxu0 %v2044
    %2363 = vmatpush.bf16.msra.mxu0 %v2040
    %2364 = vmatpush.bf16.msra.mxu0 %v2036
    %2365 = vmatpush.bf16.msra.mxu0 %v2032
    %2366 = vmatpush.bf16.msra.mxu0 %v2028
    %2367 = vmatpush.bf16.msra.mxu0 %v2024
    %2368 = vmatpush.bf16.msra.mxu0 %v2020
    %2369 = vmatpush.bf16.msra.mxu0 %v2016
    %2370 = vmatmul.bf16.gmra.mxu0 %v1170
    %v2371 = vpop.f32.mrf.mxu0
    %v2372 = vadd.f32 %v2359, %v2371
    %v2373 = vpop.f32.mrf.mxu0
    %2374 = vdwg.mxu0
    %2375 = vmatpush.bf16.msra.mxu0 %v2076
    %2376 = vmatpush.bf16.msra.mxu0 %v2072
    %2377 = vmatpush.bf16.msra.mxu0 %v2068
    %2378 = vmatpush.bf16.msra.mxu0 %v2064
    %2379 = vmatpush.bf16.msra.mxu0 %v2060
    %2380 = vmatpush.bf16.msra.mxu0 %v2056
    %2381 = vmatpush.bf16.msra.mxu0 %v2052
    %2382 = vmatpush.bf16.msra.mxu0 %v2048
    %2383 = vmatmul.bf16.gmra.mxu0 %v1171
    %v2384 = vpop.f32.mrf.mxu0
    %v2385 = vadd.f32 %v2372, %v2384
    %v2386 = vpop.f32.mrf.mxu0
    %2387 = vdwg.mxu0
    %2388 = vmatpush.bf16.msra.mxu0 %v2108
    %2389 = vmatpush.bf16.msra.mxu0 %v2104
    %2390 = vmatpush.bf16.msra.mxu0 %v2100
    %2391 = vmatpush.bf16.msra.mxu0 %v2096
    %2392 = vmatpush.bf16.msra.mxu0 %v2092
    %2393 = vmatpush.bf16.msra.mxu0 %v2088
    %2394 = vmatpush.bf16.msra.mxu0 %v2084
    %2395 = vmatpush.bf16.msra.mxu0 %v2080
    %2396 = vmatmul.bf16.gmra.mxu0 %v1172
    %v2397 = vpop.f32.mrf.mxu0
    %v2398 = vadd.f32 %v2385, %v2397
    %v2399 = vpop.f32.mrf.mxu0
    %2400 = vdwg.mxu0
    %2401 = vmatpush.bf16.msra.mxu0 %v2140
    %2402 = vmatpush.bf16.msra.mxu0 %v2136
    %2403 = vmatpush.bf16.msra.mxu0 %v2132
    %2404 = vmatpush.bf16.msra.mxu0 %v2128
    %2405 = vmatpush.bf16.msra.mxu0 %v2124
    %2406 = vmatpush.bf16.msra.mxu0 %v2120
    %2407 = vmatpush.bf16.msra.mxu0 %v2116
    %2408 = vmatpush.bf16.msra.mxu0 %v2112
    %2409 = vmatmul.bf16.gmra.mxu0 %v1173
    %v2410 = vpop.f32.mrf.mxu0
    %v2411 = vadd.f32 %v2398, %v2410
    %v2412 = vpop.f32.mrf.mxu0
    %2413 = vdwg.mxu0
    %2414 = vmatpush.bf16.msra.mxu0 %v1981
    %2415 = vmatpush.bf16.msra.mxu0 %v1977
    %2416 = vmatpush.bf16.msra.mxu0 %v1973
    %2417 = vmatpush.bf16.msra.mxu0 %v1969
    %2418 = vmatpush.bf16.msra.mxu0 %v1965
    %2419 = vmatpush.bf16.msra.mxu0 %v1961
    %2420 = vmatpush.bf16.msra.mxu0 %v1957
    %2421 = vmatpush.bf16.msra.mxu0 %v1953
    %2422 = vmatmul.bf16.gmra.mxu0 %v1168
    %v2423 = vpop.f32.mrf.mxu0
    %v2424 = vadd.f32 %v1369, %v2423
    %v2425 = vpop.f32.mrf.mxu0
    %2426 = vdwg.mxu0
    %2427 = vmatpush.bf16.msra.mxu0 %v2013
    %2428 = vmatpush.bf16.msra.mxu0 %v2009
    %2429 = vmatpush.bf16.msra.mxu0 %v2005
    %2430 = vmatpush.bf16.msra.mxu0 %v2001
    %2431 = vmatpush.bf16.msra.mxu0 %v1997
    %2432 = vmatpush.bf16.msra.mxu0 %v1993
    %2433 = vmatpush.bf16.msra.mxu0 %v1989
    %2434 = vmatpush.bf16.msra.mxu0 %v1985
    %2435 = vmatmul.bf16.gmra.mxu0 %v1169
    %v2436 = vpop.f32.mrf.mxu0
    %v2437 = vadd.f32 %v2424, %v2436
    %v2438 = vpop.f32.mrf.mxu0
    %2439 = vdwg.mxu0
    %2440 = vmatpush.bf16.msra.mxu0 %v2045
    %2441 = vmatpush.bf16.msra.mxu0 %v2041
    %2442 = vmatpush.bf16.msra.mxu0 %v2037
    %2443 = vmatpush.bf16.msra.mxu0 %v2033
    %2444 = vmatpush.bf16.msra.mxu0 %v2029
    %2445 = vmatpush.bf16.msra.mxu0 %v2025
    %2446 = vmatpush.bf16.msra.mxu0 %v2021
    %2447 = vmatpush.bf16.msra.mxu0 %v2017
    %2448 = vmatmul.bf16.gmra.mxu0 %v1170
    %v2449 = vpop.f32.mrf.mxu0
    %v2450 = vadd.f32 %v2437, %v2449
    %v2451 = vpop.f32.mrf.mxu0
    %2452 = vdwg.mxu0
    %2453 = vmatpush.bf16.msra.mxu0 %v2077
    %2454 = vmatpush.bf16.msra.mxu0 %v2073
    %2455 = vmatpush.bf16.msra.mxu0 %v2069
    %2456 = vmatpush.bf16.msra.mxu0 %v2065
    %2457 = vmatpush.bf16.msra.mxu0 %v2061
    %2458 = vmatpush.bf16.msra.mxu0 %v2057
    %2459 = vmatpush.bf16.msra.mxu0 %v2053
    %2460 = vmatpush.bf16.msra.mxu0 %v2049
    %2461 = vmatmul.bf16.gmra.mxu0 %v1171
    %v2462 = vpop.f32.mrf.mxu0
    %v2463 = vadd.f32 %v2450, %v2462
    %v2464 = vpop.f32.mrf.mxu0
    %2465 = vdwg.mxu0
    %2466 = vmatpush.bf16.msra.mxu0 %v2109
    %2467 = vmatpush.bf16.msra.mxu0 %v2105
    %2468 = vmatpush.bf16.msra.mxu0 %v2101
    %2469 = vmatpush.bf16.msra.mxu0 %v2097
    %2470 = vmatpush.bf16.msra.mxu0 %v2093
    %2471 = vmatpush.bf16.msra.mxu0 %v2089
    %2472 = vmatpush.bf16.msra.mxu0 %v2085
    %2473 = vmatpush.bf16.msra.mxu0 %v2081
    %2474 = vmatmul.bf16.gmra.mxu0 %v1172
    %v2475 = vpop.f32.mrf.mxu0
    %v2476 = vadd.f32 %v2463, %v2475
    %v2477 = vpop.f32.mrf.mxu0
    %2478 = vdwg.mxu0
    %2479 = vmatpush.bf16.msra.mxu0 %v2141
    %2480 = vmatpush.bf16.msra.mxu0 %v2137
    %2481 = vmatpush.bf16.msra.mxu0 %v2133
    %2482 = vmatpush.bf16.msra.mxu0 %v2129
    %2483 = vmatpush.bf16.msra.mxu0 %v2125
    %2484 = vmatpush.bf16.msra.mxu0 %v2121
    %2485 = vmatpush.bf16.msra.mxu0 %v2117
    %2486 = vmatpush.bf16.msra.mxu0 %v2113
    %2487 = vmatmul.bf16.gmra.mxu0 %v1173
    %v2488 = vpop.f32.mrf.mxu0
    %v2489 = vadd.f32 %v2476, %v2488
    %v2490 = vpop.f32.mrf.mxu0
    %2491 = vdwg.mxu0
    %2492 = vmatpush.bf16.msra.mxu0 %v1982
    %2493 = vmatpush.bf16.msra.mxu0 %v1978
    %2494 = vmatpush.bf16.msra.mxu0 %v1974
    %2495 = vmatpush.bf16.msra.mxu0 %v1970
    %2496 = vmatpush.bf16.msra.mxu0 %v1966
    %2497 = vmatpush.bf16.msra.mxu0 %v1962
    %2498 = vmatpush.bf16.msra.mxu0 %v1958
    %2499 = vmatpush.bf16.msra.mxu0 %v1954
    %2500 = vmatmul.bf16.gmra.mxu0 %v1168
    %v2501 = vpop.f32.mrf.mxu0
    %v2502 = vadd.f32 %v1370, %v2501
    %v2503 = vpop.f32.mrf.mxu0
    %2504 = vdwg.mxu0
    %2505 = vmatpush.bf16.msra.mxu0 %v2014
    %2506 = vmatpush.bf16.msra.mxu0 %v2010
    %2507 = vmatpush.bf16.msra.mxu0 %v2006
    %2508 = vmatpush.bf16.msra.mxu0 %v2002
    %2509 = vmatpush.bf16.msra.mxu0 %v1998
    %2510 = vmatpush.bf16.msra.mxu0 %v1994
    %2511 = vmatpush.bf16.msra.mxu0 %v1990
    %2512 = vmatpush.bf16.msra.mxu0 %v1986
    %2513 = vmatmul.bf16.gmra.mxu0 %v1169
    %v2514 = vpop.f32.mrf.mxu0
    %v2515 = vadd.f32 %v2502, %v2514
    %v2516 = vpop.f32.mrf.mxu0
    %2517 = vdwg.mxu0
    %2518 = vmatpush.bf16.msra.mxu0 %v2046
    %2519 = vmatpush.bf16.msra.mxu0 %v2042
    %2520 = vmatpush.bf16.msra.mxu0 %v2038
    %2521 = vmatpush.bf16.msra.mxu0 %v2034
    %2522 = vmatpush.bf16.msra.mxu0 %v2030
    %2523 = vmatpush.bf16.msra.mxu0 %v2026
    %2524 = vmatpush.bf16.msra.mxu0 %v2022
    %2525 = vmatpush.bf16.msra.mxu0 %v2018
    %2526 = vmatmul.bf16.gmra.mxu0 %v1170
    %v2527 = vpop.f32.mrf.mxu0
    %v2528 = vadd.f32 %v2515, %v2527
    %v2529 = vpop.f32.mrf.mxu0
    %2530 = vdwg.mxu0
    %2531 = vmatpush.bf16.msra.mxu0 %v2078
    %2532 = vmatpush.bf16.msra.mxu0 %v2074
    %2533 = vmatpush.bf16.msra.mxu0 %v2070
    %2534 = vmatpush.bf16.msra.mxu0 %v2066
    %2535 = vmatpush.bf16.msra.mxu0 %v2062
    %2536 = vmatpush.bf16.msra.mxu0 %v2058
    %2537 = vmatpush.bf16.msra.mxu0 %v2054
    %2538 = vmatpush.bf16.msra.mxu0 %v2050
    %2539 = vmatmul.bf16.gmra.mxu0 %v1171
    %v2540 = vpop.f32.mrf.mxu0
    %v2541 = vadd.f32 %v2528, %v2540
    %v2542 = vpop.f32.mrf.mxu0
    %2543 = vdwg.mxu0
    %2544 = vmatpush.bf16.msra.mxu0 %v2110
    %2545 = vmatpush.bf16.msra.mxu0 %v2106
    %2546 = vmatpush.bf16.msra.mxu0 %v2102
    %2547 = vmatpush.bf16.msra.mxu0 %v2098
    %2548 = vmatpush.bf16.msra.mxu0 %v2094
    %2549 = vmatpush.bf16.msra.mxu0 %v2090
    %2550 = vmatpush.bf16.msra.mxu0 %v2086
    %2551 = vmatpush.bf16.msra.mxu0 %v2082
    %2552 = vmatmul.bf16.gmra.mxu0 %v1172
    %v2553 = vpop.f32.mrf.mxu0
    %v2554 = vadd.f32 %v2541, %v2553
    %v2555 = vpop.f32.mrf.mxu0
    %2556 = vdwg.mxu0
    %2557 = vmatpush.bf16.msra.mxu0 %v2142
    %2558 = vmatpush.bf16.msra.mxu0 %v2138
    %2559 = vmatpush.bf16.msra.mxu0 %v2134
    %2560 = vmatpush.bf16.msra.mxu0 %v2130
    %2561 = vmatpush.bf16.msra.mxu0 %v2126
    %2562 = vmatpush.bf16.msra.mxu0 %v2122
    %2563 = vmatpush.bf16.msra.mxu0 %v2118
    %2564 = vmatpush.bf16.msra.mxu0 %v2114
    %2565 = vmatmul.bf16.gmra.mxu0 %v1173
    %v2566 = vpop.f32.mrf.mxu0
    %v2567 = vadd.f32 %v2554, %v2566
    %v2568 = vpop.f32.mrf.mxu0
    %2569 = vdwg.mxu0
    %2570 = vmatpush.bf16.msra.mxu0 %v1983
    %2571 = vmatpush.bf16.msra.mxu0 %v1979
    %2572 = vmatpush.bf16.msra.mxu0 %v1975
    %2573 = vmatpush.bf16.msra.mxu0 %v1971
    %2574 = vmatpush.bf16.msra.mxu0 %v1967
    %2575 = vmatpush.bf16.msra.mxu0 %v1963
    %2576 = vmatpush.bf16.msra.mxu0 %v1959
    %2577 = vmatpush.bf16.msra.mxu0 %v1955
    %2578 = vmatmul.bf16.gmra.mxu0 %v1168
    %v2579 = vpop.f32.mrf.mxu0
    %v2580 = vadd.f32 %v1371, %v2579
    %v2581 = vpop.f32.mrf.mxu0
    %2582 = vdwg.mxu0
    %2583 = vmatpush.bf16.msra.mxu0 %v2015
    %2584 = vmatpush.bf16.msra.mxu0 %v2011
    %2585 = vmatpush.bf16.msra.mxu0 %v2007
    %2586 = vmatpush.bf16.msra.mxu0 %v2003
    %2587 = vmatpush.bf16.msra.mxu0 %v1999
    %2588 = vmatpush.bf16.msra.mxu0 %v1995
    %2589 = vmatpush.bf16.msra.mxu0 %v1991
    %2590 = vmatpush.bf16.msra.mxu0 %v1987
    %2591 = vmatmul.bf16.gmra.mxu0 %v1169
    %v2592 = vpop.f32.mrf.mxu0
    %v2593 = vadd.f32 %v2580, %v2592
    %v2594 = vpop.f32.mrf.mxu0
    %2595 = vdwg.mxu0
    %2596 = vmatpush.bf16.msra.mxu0 %v2047
    %2597 = vmatpush.bf16.msra.mxu0 %v2043
    %2598 = vmatpush.bf16.msra.mxu0 %v2039
    %2599 = vmatpush.bf16.msra.mxu0 %v2035
    %2600 = vmatpush.bf16.msra.mxu0 %v2031
    %2601 = vmatpush.bf16.msra.mxu0 %v2027
    %2602 = vmatpush.bf16.msra.mxu0 %v2023
    %2603 = vmatpush.bf16.msra.mxu0 %v2019
    %2604 = vmatmul.bf16.gmra.mxu0 %v1170
    %v2605 = vpop.f32.mrf.mxu0
    %v2606 = vadd.f32 %v2593, %v2605
    %v2607 = vpop.f32.mrf.mxu0
    %2608 = vdwg.mxu0
    %2609 = vmatpush.bf16.msra.mxu0 %v2079
    %2610 = vmatpush.bf16.msra.mxu0 %v2075
    %2611 = vmatpush.bf16.msra.mxu0 %v2071
    %2612 = vmatpush.bf16.msra.mxu0 %v2067
    %2613 = vmatpush.bf16.msra.mxu0 %v2063
    %2614 = vmatpush.bf16.msra.mxu0 %v2059
    %2615 = vmatpush.bf16.msra.mxu0 %v2055
    %2616 = vmatpush.bf16.msra.mxu0 %v2051
    %2617 = vmatmul.bf16.gmra.mxu0 %v1171
    %v2618 = vpop.f32.mrf.mxu0
    %v2619 = vadd.f32 %v2606, %v2618
    %v2620 = vpop.f32.mrf.mxu0
    %2621 = vdwg.mxu0
    %2622 = vmatpush.bf16.msra.mxu0 %v2111
    %2623 = vmatpush.bf16.msra.mxu0 %v2107
    %2624 = vmatpush.bf16.msra.mxu0 %v2103
    %2625 = vmatpush.bf16.msra.mxu0 %v2099
    %2626 = vmatpush.bf16.msra.mxu0 %v2095
    %2627 = vmatpush.bf16.msra.mxu0 %v2091
    %2628 = vmatpush.bf16.msra.mxu0 %v2087
    %2629 = vmatpush.bf16.msra.mxu0 %v2083
    %2630 = vmatmul.bf16.gmra.mxu0 %v1172
    %v2631 = vpop.f32.mrf.mxu0
    %v2632 = vadd.f32 %v2619, %v2631
    %v2633 = vpop.f32.mrf.mxu0
    %2634 = vdwg.mxu0
    %2635 = vmatpush.bf16.msra.mxu0 %v2143
    %2636 = vmatpush.bf16.msra.mxu0 %v2139
    %2637 = vmatpush.bf16.msra.mxu0 %v2135
    %2638 = vmatpush.bf16.msra.mxu0 %v2131
    %2639 = vmatpush.bf16.msra.mxu0 %v2127
    %2640 = vmatpush.bf16.msra.mxu0 %v2123
    %2641 = vmatpush.bf16.msra.mxu0 %v2119
    %2642 = vmatpush.bf16.msra.mxu0 %v2115
    %2643 = vmatmul.bf16.gmra.mxu0 %v1173
    %v2644 = vpop.f32.mrf.mxu0
    %v2645 = vadd.f32 %v2632, %v2644
    %v2646 = vpop.f32.mrf.mxu0
    %2647 = vdwg.mxu0
    %2648 = vst [vmem:[%s5] sm:$0xff] %v2411
    %2649 = vst [vmem:[%s5 + $0x8] sm:$0xff] %v2489
    %2650 = vst [vmem:[%s5 + $0x10] sm:$0xff] %v2567
    %2651 = vst [vmem:[%s5 + $0x18] sm:$0xff] %v2645
  $region29: #{comparsion_models_forward.1} parent=0 // pred_fallthru
    _
  // Predicated region
  $region30: #{comparsion_models_forward.1} parent=0 // pred_check
    _
  $region31: #{comparsion_models_forward.1} parent=0 // pred_check_branch
    %2653 = sbr.rel (0) target = $region33
  $region32: #{comparsion_models_forward.1} parent=0 // pred_region
    _
  $region33: #{comparsion_models_forward.1} parent=0 // pred_fallthru
    _
  // Predicated region
  $region34: #{comparsion_models_forward.1} parent=0 // pred_check
    _
  $region35: #{comparsion_models_forward.1} parent=0 // pred_check_branch
    %2655 = sbr.rel (0) target = $region37
  $region36: #{comparsion_models_forward.1} parent=0 // pred_region
    _
  $region37: #{comparsion_models_forward.1} parent=0 // pred_fallthru
    _

</llo_original>
